<compile_context>
chip_gen: v6e
topology: v6e:2x2x1
jax: 0.10.0
libtpu: 0.0.40
codegen_flags: <defaults>
</compile_context>

<pallas_src>
import jax
import jax.numpy as jnp
from jax.experimental import pallas as pl
from jax.experimental.pallas import tpu as pltpu

SCALE = 0.2          # LeakyReLU negative slope
BN_EPS = 1e-5        # PyTorch BatchNorm1d default eps

IN_DIM = 100
IN_PAD = 128         # latent padded to one full lane tile
H = 512
OUT_DIM = 784
OUT_PAD = 896        # 7 * 128 -> lane-dense layer-3 matmul and output store


def _gen_kernel(x_ref, w1_ref, b1_ref, w2_ref, b2_ref, w3_ref, b3_ref, o_ref):
    # Block 1: fused Linear+BN, LeakyReLU (Dropout = identity in eval mode).
    h = jnp.dot(x_ref[...], w1_ref[...],
                preferred_element_type=jnp.float32) + b1_ref[...]
    h = jnp.where(h >= 0.0, h, SCALE * h)

    # Block 2: fused Linear+BN, LeakyReLU.
    h = jnp.dot(h.astype(jnp.bfloat16), w2_ref[...],
                preferred_element_type=jnp.float32) + b2_ref[...]
    h = jnp.where(h >= 0.0, h, SCALE * h)

    # Block 3: fused Linear+BN, Tanh.  Store in output dtype (bf16 by default)
    # so the writeback DMA moves half the bytes of an f32 store.
    h = jnp.dot(h.astype(jnp.bfloat16), w3_ref[...],
                preferred_element_type=jnp.float32) + b3_ref[...]
    o_ref[...] = jnp.tanh(h).astype(o_ref.dtype)


def _round_up(n, m):
    return (n + m - 1) // m * m


def _choose_batch_tile(B, tb_max):
    """Pick (TB, Bp) with TB a multiple of 8, padding waste < 8 rows per tile,
    and (when B is large enough) at least 2 grid steps so the batch axis can
    split across the two TensorCores on v7x."""
    n_tiles = max(1, -(-B // tb_max))        # ceil(B / tb_max)
    if n_tiles == 1 and B >= 128:
        n_tiles = 2                          # guarantee grid >= 2 on v7x
    TB = _round_up(-(-B // n_tiles), 8)      # ceil(B / n_tiles), sublane-aligned
    return TB, TB * n_tiles


def fold_params(params, weight_dtype=jnp.bfloat16):
    """Fold eval-mode BN + bias into each Linear, pad to lane-friendly shapes,
    cast weights to bf16 (biases stay f32, added post-accumulation)."""
    dims = [(IN_DIM, H), (H, H), (H, OUT_DIM)]
    pads = [(IN_PAD, H), (H, H), (H, OUT_PAD)]
    fp = {}
    for i, ((fi, fo), (pi, po)) in enumerate(zip(dims, pads), start=1):
        s = params[f"g{i}"] * jax.lax.rsqrt(params[f"rv{i}"] + BN_EPS)     # (1, fo)
        w = params[f"w{i}"] * s                                            # (fi, fo)
        b = (params[f"b{i}"] - params[f"rm{i}"]) * s + params[f"be{i}"]    # (1, fo)
        wp = jnp.zeros((pi, po), jnp.float32).at[:fi, :fo].set(w)
        bp = jnp.zeros((1, po), jnp.float32).at[:, :fo].set(b)
        fp[f"w{i}"] = wp.astype(weight_dtype)
        fp[f"b{i}"] = bp
    return fp


def gen_forward(x, folded, *, tb=1024, out_dtype=jnp.bfloat16, depad=True):
    """x: (B, 100) float32. folded: output of fold_params.

    Returns (B, 784) in `out_dtype` when depad=True, else the padded
    (Bp, 896) kernel output (consumer slices inside its own fusion)."""
    B = x.shape[0]
    TB, Bp = _choose_batch_tile(B, tb)

    # Pad latent 100 -> 128 and batch to a multiple of TB (zero rows/cols are
    # matched by zero weight rows, so they contribute nothing).
    xp = jnp.zeros((Bp, IN_PAD), jnp.bfloat16).at[:B, :IN_DIM].set(
        x.astype(jnp.bfloat16))

    def act_spec(cols):
        return pl.BlockSpec((TB, cols), lambda i: (i, 0))

    def const_spec(shape):
        # Same block for every grid step -> weights stay VMEM-resident.
        return pl.BlockSpec(shape, lambda i: (0, 0))

    out = pl.pallas_call(
        _gen_kernel,
        out_shape=jax.ShapeDtypeStruct((Bp, OUT_PAD), out_dtype),
        grid=(Bp // TB,),
        in_specs=[
            act_spec(IN_PAD),
            const_spec((IN_PAD, H)),   const_spec((1, H)),
            const_spec((H, H)),        const_spec((1, H)),
            const_spec((H, OUT_PAD)),  const_spec((1, OUT_PAD)),
        ],
        out_specs=act_spec(OUT_PAD),
        compiler_params=pltpu.CompilerParams(
            dimension_semantics=("parallel",),
            vmem_limit_bytes=32 << 20,
        ),
    )(xp, folded["w1"], folded["b1"], folded["w2"], folded["b2"],
      folded["w3"], folded["b3"])

    if depad:
        # Slice on the bf16 output (half the bytes of an f32 depad copy).
        out = out[:B, :OUT_DIM]
    return out


def init_params(key):
    """Deterministic parameter init, shapes matching Gen.__init__ (eval mode)."""
    dims = [(IN_DIM, H), (H, H), (H, OUT_DIM)]
    params = {}
    for li, (fan_in, fan_out) in enumerate(dims, start=1):
        key, kw, kb, kg, kbe, krm = jax.random.split(key, 6)
        bound = 1.0 / jnp.sqrt(fan_in)
        # Linear weight stored as (in, out) == torch weight.T
        params[f"w{li}"] = jax.random.uniform(
            kw, (fan_in, fan_out), jnp.float32, -bound, bound)
        params[f"b{li}"] = jax.random.uniform(
            kb, (1, fan_out), jnp.float32, -bound, bound)
        # BatchNorm1d affine + running stats
        params[f"g{li}"] = 1.0 + 0.1 * jax.random.normal(kg, (1, fan_out), jnp.float32)
        params[f"be{li}"] = 0.1 * jax.random.normal(kbe, (1, fan_out), jnp.float32)
        params[f"rm{li}"] = 0.05 * jax.random.normal(krm, (1, fan_out), jnp.float32)
        params[f"rv{li}"] = jnp.ones((1, fan_out), jnp.float32)
    return params


def _reference(x, p):
    """Pure-JAX f32 reference of the original (unfused) eval-mode forward."""
    def bn(h, i):
        h = (h - p[f"rm{i}"]) * jax.lax.rsqrt(p[f"rv{i}"] + BN_EPS)
        return h * p[f"g{i}"] + p[f"be{i}"]

    h = bn(x @ p["w1"] + p["b1"], 1)
    h = jnp.where(h >= 0, h, SCALE * h)
    h = bn(h @ p["w2"] + p["b2"], 2)
    h = jnp.where(h >= 0, h, SCALE * h)
    h = bn(h @ p["w3"] + p["b3"], 3)
    return jnp.tanh(h)


if __name__ == "__main__":
    key = jax.random.PRNGKey(0)
    key, kx = jax.random.split(key)

    params = init_params(key)
    folded = fold_params(params)                           # offline BN/bias fold

    # Small serving-style batch (grid = 1).
    B = 8
    x = jax.random.normal(kx, (B, IN_DIM), jnp.float32)    # latent input (B, 100)
    out = jax.block_until_ready(gen_forward(x, folded))
    ref = _reference(x, params)
    assert out.shape == (B, OUT_DIM), out.shape
    assert out.dtype == jnp.bfloat16, out.dtype
    # bf16 weights/activations/output on the MXU path => loosened tolerance.
    err = float(jnp.max(jnp.abs(out.astype(jnp.float32) - ref)))
    assert err < 4e-2, err

    # Larger batch exercising the multi-tile grid + padded batch rows.
    key, kx2 = jax.random.split(key)
    B2 = 300
    x2 = jax.random.normal(kx2, (B2, IN_DIM), jnp.float32)
    out2 = jax.block_until_ready(gen_forward(x2, folded, tb=128))
    ref2 = _reference(x2, params)
    assert out2.shape == (B2, OUT_DIM), out2.shape
    err2 = float(jnp.max(jnp.abs(out2.astype(jnp.float32) - ref2)))
    assert err2 < 4e-2, err2

    print("KERNEL_OK")
</pallas_src>

<mosaic_0001>
module attributes {stable_mosaic.version = 11 : i64} {
  func.func @_gen_kernel(%arg0: i32, %arg1: memref<8x128xbf16, #tpu.memory_space<vmem>>, %arg2: memref<128x512xbf16, #tpu.memory_space<vmem>>, %arg3: memref<1x512xf32, #tpu.memory_space<vmem>>, %arg4: memref<512x512xbf16, #tpu.memory_space<vmem>>, %arg5: memref<1x512xf32, #tpu.memory_space<vmem>>, %arg6: memref<512x896xbf16, #tpu.memory_space<vmem>>, %arg7: memref<1x896xf32, #tpu.memory_space<vmem>>, %arg8: memref<8x896xbf16, #tpu.memory_space<vmem>>) attributes {dimension_semantics = [#tpu.dimension_semantics<parallel>], iteration_bounds = array<i64: 1>, scalar_prefetch = 0 : i64, scratch_operands = 0 : i64, tpu.core_type = #tpu.core_type<tc>, window_params = [{transform_indices = @transform_0, window_bounds = array<i64: 8, 128>}, {pipeline_mode = #tpu.pipeline_mode<synchronous>, transform_indices = @transform_1, window_bounds = array<i64: 128, 512>}, {pipeline_mode = #tpu.pipeline_mode<synchronous>, transform_indices = @transform_2, window_bounds = array<i64: 1, 512>}, {pipeline_mode = #tpu.pipeline_mode<synchronous>, transform_indices = @transform_3, window_bounds = array<i64: 512, 512>}, {pipeline_mode = #tpu.pipeline_mode<synchronous>, transform_indices = @transform_4, window_bounds = array<i64: 1, 512>}, {pipeline_mode = #tpu.pipeline_mode<synchronous>, transform_indices = @transform_5, window_bounds = array<i64: 512, 896>}, {pipeline_mode = #tpu.pipeline_mode<synchronous>, transform_indices = @transform_6, window_bounds = array<i64: 1, 896>}, {transform_indices = @transform_7, window_bounds = array<i64: 8, 896>}]} {
    %c0 = arith.constant 0 : index
    %c0_0 = arith.constant 0 : index
    %0 = vector.load %arg1[%c0, %c0_0] : memref<8x128xbf16, #tpu.memory_space<vmem>>, vector<8x128xbf16>
    %c0_1 = arith.constant 0 : index
    %c0_2 = arith.constant 0 : index
    %1 = vector.load %arg2[%c0_1, %c0_2] : memref<128x512xbf16, #tpu.memory_space<vmem>>, vector<128x512xbf16>
    %cst = arith.constant dense<0.000000e+00> : vector<8x512xf32>
    %2 = tpu.matmul %0, %1, %cst {dimension_numbers = #tpu.dot_dimension_numbers<[1], [0], [0], [1], [0, 0, 1, 1], [], []>} : vector<8x128xbf16>, vector<128x512xbf16>, vector<8x512xf32> -> vector<8x512xf32>
    %c0_3 = arith.constant 0 : index
    %c0_4 = arith.constant 0 : index
    %3 = vector.load %arg3[%c0_3, %c0_4] : memref<1x512xf32, #tpu.memory_space<vmem>>, vector<1x512xf32>
    %4 = vector.broadcast %3 : vector<1x512xf32> to vector<8x512xf32>
    %5 = arith.addf %2, %4 : vector<8x512xf32>
    %cst_5 = arith.constant 0.000000e+00 : f32
    %6 = vector.broadcast %cst_5 : f32 to vector<8x512xf32>
    %7 = arith.cmpf oge, %5, %6 : vector<8x512xf32>
    %cst_6 = arith.constant 2.000000e-01 : f32
    %8 = vector.broadcast %cst_6 : f32 to vector<8x512xf32>
    %9 = arith.mulf %8, %5 : vector<8x512xf32>
    %10 = arith.select %7, %5, %9 : vector<8x512xi1>, vector<8x512xf32>
    %11 = arith.truncf %10 : vector<8x512xf32> to vector<8x512xbf16>
    %c0_7 = arith.constant 0 : index
    %c0_8 = arith.constant 0 : index
    %12 = vector.load %arg4[%c0_7, %c0_8] : memref<512x512xbf16, #tpu.memory_space<vmem>>, vector<512x512xbf16>
    %cst_9 = arith.constant dense<0.000000e+00> : vector<8x512xf32>
    %13 = tpu.matmul %11, %12, %cst_9 {dimension_numbers = #tpu.dot_dimension_numbers<[1], [0], [0], [1], [0, 0, 1, 1], [], []>} : vector<8x512xbf16>, vector<512x512xbf16>, vector<8x512xf32> -> vector<8x512xf32>
    %c0_10 = arith.constant 0 : index
    %c0_11 = arith.constant 0 : index
    %14 = vector.load %arg5[%c0_10, %c0_11] : memref<1x512xf32, #tpu.memory_space<vmem>>, vector<1x512xf32>
    %15 = vector.broadcast %14 : vector<1x512xf32> to vector<8x512xf32>
    %16 = arith.addf %13, %15 : vector<8x512xf32>
    %cst_12 = arith.constant 0.000000e+00 : f32
    %17 = vector.broadcast %cst_12 : f32 to vector<8x512xf32>
    %18 = arith.cmpf oge, %16, %17 : vector<8x512xf32>
    %cst_13 = arith.constant 2.000000e-01 : f32
    %19 = vector.broadcast %cst_13 : f32 to vector<8x512xf32>
    %20 = arith.mulf %19, %16 : vector<8x512xf32>
    %21 = arith.select %18, %16, %20 : vector<8x512xi1>, vector<8x512xf32>
    %22 = arith.truncf %21 : vector<8x512xf32> to vector<8x512xbf16>
    %c0_14 = arith.constant 0 : index
    %c0_15 = arith.constant 0 : index
    %23 = vector.load %arg6[%c0_14, %c0_15] : memref<512x896xbf16, #tpu.memory_space<vmem>>, vector<512x896xbf16>
    %cst_16 = arith.constant dense<0.000000e+00> : vector<8x896xf32>
    %24 = tpu.matmul %22, %23, %cst_16 {dimension_numbers = #tpu.dot_dimension_numbers<[1], [0], [0], [1], [0, 0, 1, 1], [], []>} : vector<8x512xbf16>, vector<512x896xbf16>, vector<8x896xf32> -> vector<8x896xf32>
    %c0_17 = arith.constant 0 : index
    %c0_18 = arith.constant 0 : index
    %25 = vector.load %arg7[%c0_17, %c0_18] : memref<1x896xf32, #tpu.memory_space<vmem>>, vector<1x896xf32>
    %26 = vector.broadcast %25 : vector<1x896xf32> to vector<8x896xf32>
    %27 = arith.addf %24, %26 : vector<8x896xf32>
    %28 = math.tanh %27 : vector<8x896xf32>
    %29 = arith.truncf %28 : vector<8x896xf32> to vector<8x896xbf16>
    %c0_19 = arith.constant 0 : index
    %c0_20 = arith.constant 0 : index
    %30 = vector.load %arg8[%c0_19, %c0_20] : memref<8x896xbf16, #tpu.memory_space<vmem>>, vector<8x896xbf16>
    tpu.vector_store %arg8[%c0_19, %c0_20], %29 {strides = array<i32>} : memref<8x896xbf16, #tpu.memory_space<vmem>>, vector<8x896xbf16>,
    return
  }
  func.func @transform_0(%arg0: i32) -> (i32, i32) {
    %c0_i32 = arith.constant 0 : i32
    %c0_i32_0 = arith.constant 0 : i32
    return %arg0, %c0_i32 : i32, i32
  }
  func.func @transform_1(%arg0: i32) -> (i32, i32) {
    %c0_i32 = arith.constant 0 : i32
    %c0_i32_0 = arith.constant 0 : i32
    %c0_i32_1 = arith.constant 0 : i32
    return %c0_i32, %c0_i32_0 : i32, i32
  }
  func.func @transform_2(%arg0: i32) -> (i32, i32) {
    %c0_i32 = arith.constant 0 : i32
    %c0_i32_0 = arith.constant 0 : i32
    %c0_i32_1 = arith.constant 0 : i32
    return %c0_i32, %c0_i32_0 : i32, i32
  }
  func.func @transform_3(%arg0: i32) -> (i32, i32) {
    %c0_i32 = arith.constant 0 : i32
    %c0_i32_0 = arith.constant 0 : i32
    %c0_i32_1 = arith.constant 0 : i32
    return %c0_i32, %c0_i32_0 : i32, i32
  }
  func.func @transform_4(%arg0: i32) -> (i32, i32) {
    %c0_i32 = arith.constant 0 : i32
    %c0_i32_0 = arith.constant 0 : i32
    %c0_i32_1 = arith.constant 0 : i32
    return %c0_i32, %c0_i32_0 : i32, i32
  }
  func.func @transform_5(%arg0: i32) -> (i32, i32) {
    %c0_i32 = arith.constant 0 : i32
    %c0_i32_0 = arith.constant 0 : i32
    %c0_i32_1 = arith.constant 0 : i32
    return %c0_i32, %c0_i32_0 : i32, i32
  }
  func.func @transform_6(%arg0: i32) -> (i32, i32) {
    %c0_i32 = arith.constant 0 : i32
    %c0_i32_0 = arith.constant 0 : i32
    %c0_i32_1 = arith.constant 0 : i32
    return %c0_i32, %c0_i32_0 : i32, i32
  }
  func.func @transform_7(%arg0: i32) -> (i32, i32) {
    %c0_i32 = arith.constant 0 : i32
    %c0_i32_0 = arith.constant 0 : i32
    return %arg0, %c0_i32 : i32, i32
  }
}

</mosaic_0001>

<llo_original>
// kernel: tpu_custom_call.1
$region0: #{tpu_custom_call.1}
  #allocation0 [shape = 'u32[]', space=smem, size = 0x4, offset = 0x4, fixed_abs, tag = 'smem constant byte address 0x4 - core index']
  #allocation1 [shape = 'u32[144,128]{1,0:T(1,128)}', space=vmem, size = 0x12000, scoped, tag = 'internal scratch']
  %s0 = inlined_call_operand.hbm [shape: bf16[8,128], index: 0, kind: input, shape index: {}]
  %s1 = inlined_call_operand.hbm [shape: bf16[128,512], index: 1, kind: input, shape index: {}]
  %s2 = inlined_call_operand.hbm [shape: f32[1,512], index: 2, kind: input, shape index: {}]
  %s3 = inlined_call_operand.hbm [shape: bf16[512,512], index: 3, kind: input, shape index: {}]
  %s4 = inlined_call_operand.hbm [shape: f32[1,512], index: 4, kind: input, shape index: {}]
  %s5 = inlined_call_operand.hbm [shape: bf16[512,896], index: 5, kind: input, shape index: {}]
  %s6 = inlined_call_operand.vmem [shape: f32[1,896], index: 6, kind: input, shape index: {}]
  %s7 = inlined_call_operand.hbm [shape: bf16[8,896], index: 7, kind: output, shape index: {}]
  %s8 = sld [smem:[#allocation0]]
  $region62: #{tpu_custom_call.1} parent=0
    _
  %s10 = ssub.s32 1, %s8
  %s11 = scalar_select 0, %s10, %s8
  $region1: #{tpu_custom_call.1} parent=0
    #allocation2 [shape = 'u8[2048]{0}', space=vmem, size = 0x800, scoped, tag = 'input window, operand 0, single buffered']
    #allocation3 [shape = 's32[1]{0}', space=sflag, size = 0x4, scoped, tag = 'scoped memory for tpu_custom_call.1']
    #allocation4 [shape = 's32[1]{0}', space=sflag, size = 0x4, scoped, tag = 'scoped memory for tpu_custom_call.1']
    #allocation5 [shape = 'u8[131072]{0}', space=vmem, size = 0x20000, scoped, tag = 'input window, operand 1, single buffered']
    #allocation6 [shape = 's32[1]{0}', space=sflag, size = 0x4, scoped, tag = 'scoped memory for tpu_custom_call.1']
    #allocation7 [shape = 'u8[2048]{0}', space=vmem, size = 0x800, scoped, tag = 'input window, operand 2, single buffered']
    #allocation8 [shape = 'u8[524288]{0}', space=vmem, size = 0x80000, scoped, tag = 'input window, operand 3, single buffered']
    #allocation9 [shape = 's32[1]{0}', space=sflag, size = 0x4, scoped, tag = 'scoped memory for tpu_custom_call.1']
    #allocation10 [shape = 'u8[2048]{0}', space=vmem, size = 0x800, scoped, tag = 'input window, operand 4, single buffered']
    #allocation11 [shape = 'u8[917504]{0}', space=vmem, size = 0xe0000, scoped, tag = 'input window, operand 5, single buffered']
    #allocation12 [shape = 's32[1]{0}', space=sflag, size = 0x4, scoped, tag = 'scoped memory for tpu_custom_call.1']
    #allocation13 [shape = 'u8[14336]{0}', space=vmem, size = 0x3800, scoped, tag = 'output window, operand 0, single buffered']
    %12 = vsyncpa [#allocation3], 0
    %13 = vsyncpa [#allocation6], 0
    %14 = vsyncpa [#allocation9], 0
    %15 = vsyncpa [#allocation12], 0
    %16 = vsyncpa [#allocation4], 0
    // Predicated region
    $region2: #{tpu_custom_call.1} parent=1 // pred_check
      _
    $region3: #{tpu_custom_call.1} parent=1 // pred_check_branch
      %18 = sbr.rel (0) target = $region5
    $region4: #{tpu_custom_call.1} parent=1 // pred_region
      %s20 = ssub.s32 64, 64
      %21 = vsyncadd [#allocation3], %s20
      %s23 = sshll.u32 [#allocation2], 4
      %s24 = int_to_ptr.vmem [resolvable:$true] %s23
      %26 = dma.hbm_to_vmem [thread:$0]  %s0, 64, %s24, [#allocation3]
    $region5: #{tpu_custom_call.1} parent=1 // pred_fallthru
      _
    // Predicated region
    $region6: #{tpu_custom_call.1} parent=1 // pred_check
      _
    $region7: #{tpu_custom_call.1} parent=1 // pred_check_branch
      %28 = sbr.rel (0) target = $region9
    $region8: #{tpu_custom_call.1} parent=1 // pred_region
      %s30 = ssub.s32 4096, 4096
      %31 = vsyncadd [#allocation6], %s30
      %s32 = sshll.u32 [#allocation5], 4
      %s33 = int_to_ptr.vmem [resolvable:$true] %s32
      %38 = dma.hbm_to_vmem [thread:$0]  %s1, 4096, %s33, [#allocation6], 256, 256, 16
    $region9: #{tpu_custom_call.1} parent=1 // pred_fallthru
      _
    // Predicated region
    $region10: #{tpu_custom_call.1} parent=1 // pred_check
      _
    $region11: #{tpu_custom_call.1} parent=1 // pred_check_branch
      %40 = sbr.rel (0) target = $region13
    $region12: #{tpu_custom_call.1} parent=1 // pred_region
      %s42 = ssub.s32 64, 64
      %43 = vsyncadd [#allocation6], %s42
      %s45 = sshll.u32 [#allocation7], 4
      %s46 = int_to_ptr.vmem [resolvable:$true] %s45
      %48 = dma.hbm_to_vmem [thread:$0]  %s2, 64, %s46, [#allocation6]
    $region13: #{tpu_custom_call.1} parent=1 // pred_fallthru
      _
    // Predicated region
    $region14: #{tpu_custom_call.1} parent=1 // pred_check
      _
    $region15: #{tpu_custom_call.1} parent=1 // pred_check_branch
      %50 = sbr.rel (0) target = $region17
    $region16: #{tpu_custom_call.1} parent=1 // pred_region
      %s52 = ssub.s32 16384, 16384
      %53 = vsyncadd [#allocation9], %s52
      %s54 = sshll.u32 [#allocation8], 4
      %s55 = int_to_ptr.vmem [resolvable:$true] %s54
      %60 = dma.hbm_to_vmem [thread:$0]  %s3, 16384, %s55, [#allocation9], 256, 256, 16
    $region17: #{tpu_custom_call.1} parent=1 // pred_fallthru
      _
    // Predicated region
    $region18: #{tpu_custom_call.1} parent=1 // pred_check
      _
    $region19: #{tpu_custom_call.1} parent=1 // pred_check_branch
      %62 = sbr.rel (0) target = $region21
    $region20: #{tpu_custom_call.1} parent=1 // pred_region
      %s64 = ssub.s32 64, 64
      %65 = vsyncadd [#allocation9], %s64
      %s67 = sshll.u32 [#allocation10], 4
      %s68 = int_to_ptr.vmem [resolvable:$true] %s67
      %70 = dma.hbm_to_vmem [thread:$0]  %s4, 64, %s68, [#allocation9]
    $region21: #{tpu_custom_call.1} parent=1 // pred_fallthru
      _
    // Predicated region
    $region22: #{tpu_custom_call.1} parent=1 // pred_check
      _
    $region23: #{tpu_custom_call.1} parent=1 // pred_check_branch
      %72 = sbr.rel (0) target = $region25
    $region24: #{tpu_custom_call.1} parent=1 // pred_region
      %s74 = ssub.s32 28672, 28672
      %75 = vsyncadd [#allocation12], %s74
      %s76 = sshll.u32 [#allocation11], 4
      %s77 = int_to_ptr.vmem [resolvable:$true] %s76
      %82 = dma.hbm_to_vmem [thread:$0]  %s5, 28672, %s77, [#allocation12], 448, 448, 28
    $region25: #{tpu_custom_call.1} parent=1 // pred_fallthru
      _
    // Predicated region
    $region26: #{tpu_custom_call.1} parent=1 // pred_check
      _
    $region27: #{tpu_custom_call.1} parent=1 // pred_check_branch
      %84 = sbr.rel (0) target = $region29
    $region28: #{tpu_custom_call.1} parent=1 // pred_region
      _
    $region29: #{tpu_custom_call.1} parent=1 // pred_fallthru
      _
    // Predicated region
    $region30: #{tpu_custom_call.1} parent=1 // pred_check
      _
    $region31: #{tpu_custom_call.1} parent=1 // pred_check_branch
      %86 = sbr.rel (0) target = $region33
    $region32: #{tpu_custom_call.1} parent=1 // pred_region
      %87 = dma.done [#allocation3], 64
    $region33: #{tpu_custom_call.1} parent=1 // pred_fallthru
      _
    // Predicated region
    $region34: #{tpu_custom_call.1} parent=1 // pred_check
      _
    $region35: #{tpu_custom_call.1} parent=1 // pred_check_branch
      %89 = sbr.rel (0) target = $region37
    $region36: #{tpu_custom_call.1} parent=1 // pred_region
      %90 = dma.done [#allocation6], 4096
    $region37: #{tpu_custom_call.1} parent=1 // pred_fallthru
      _
    // Predicated region
    $region38: #{tpu_custom_call.1} parent=1 // pred_check
      _
    $region39: #{tpu_custom_call.1} parent=1 // pred_check_branch
      %92 = sbr.rel (0) target = $region41
    $region40: #{tpu_custom_call.1} parent=1 // pred_region
      %93 = dma.done [#allocation6], 64
    $region41: #{tpu_custom_call.1} parent=1 // pred_fallthru
      _
    // Predicated region
    $region42: #{tpu_custom_call.1} parent=1 // pred_check
      _
    $region43: #{tpu_custom_call.1} parent=1 // pred_check_branch
      %95 = sbr.rel (0) target = $region45
    $region44: #{tpu_custom_call.1} parent=1 // pred_region
      %96 = dma.done [#allocation9], 16384
    $region45: #{tpu_custom_call.1} parent=1 // pred_fallthru
      _
    // Predicated region
    $region46: #{tpu_custom_call.1} parent=1 // pred_check
      _
    $region47: #{tpu_custom_call.1} parent=1 // pred_check_branch
      %98 = sbr.rel (0) target = $region49
    $region48: #{tpu_custom_call.1} parent=1 // pred_region
      %99 = dma.done [#allocation9], 64
    $region49: #{tpu_custom_call.1} parent=1 // pred_fallthru
      _
    // Predicated region
    $region50: #{tpu_custom_call.1} parent=1 // pred_check
      _
    $region51: #{tpu_custom_call.1} parent=1 // pred_check_branch
      %101 = sbr.rel (0) target = $region53
    $region52: #{tpu_custom_call.1} parent=1 // pred_region
      %102 = dma.done [#allocation12], 28672
    $region53: #{tpu_custom_call.1} parent=1 // pred_fallthru
      _
    %v104 = vld [vmem:[#allocation2] sm:$0xf]
    %v105 = vld [vmem:[#allocation5] sm:$0xff]
    %v106 = vld [vmem:[#allocation5 + $0x8] sm:$0xff]
    %v107 = vld [vmem:[#allocation5 + $0x10] sm:$0xff]
    %v108 = vld [vmem:[#allocation5 + $0x18] sm:$0xff]
    %v109 = vld [vmem:[#allocation5 + $0x20] sm:$0xff]
    %v110 = vld [vmem:[#allocation5 + $0x28] sm:$0xff]
    %v111 = vld [vmem:[#allocation5 + $0x30] sm:$0xff]
    %v112 = vld [vmem:[#allocation5 + $0x38] sm:$0xff]
    %v113 = vld [vmem:[#allocation5 + $0x40] sm:$0xff]
    %v114 = vld [vmem:[#allocation5 + $0x48] sm:$0xff]
    %v115 = vld [vmem:[#allocation5 + $0x50] sm:$0xff]
    %v116 = vld [vmem:[#allocation5 + $0x58] sm:$0xff]
    %v117 = vld [vmem:[#allocation5 + $0x60] sm:$0xff]
    %v118 = vld [vmem:[#allocation5 + $0x68] sm:$0xff]
    %v119 = vld [vmem:[#allocation5 + $0x70] sm:$0xff]
    %v120 = vld [vmem:[#allocation5 + $0x78] sm:$0xff]
    %v121 = vld [vmem:[#allocation5 + $0x80] sm:$0xff]
    %v122 = vld [vmem:[#allocation5 + $0x88] sm:$0xff]
    %v123 = vld [vmem:[#allocation5 + $0x90] sm:$0xff]
    %v124 = vld [vmem:[#allocation5 + $0x98] sm:$0xff]
    %v125 = vld [vmem:[#allocation5 + $0xa0] sm:$0xff]
    %v126 = vld [vmem:[#allocation5 + $0xa8] sm:$0xff]
    %v127 = vld [vmem:[#allocation5 + $0xb0] sm:$0xff]
    %v128 = vld [vmem:[#allocation5 + $0xb8] sm:$0xff]
    %v129 = vld [vmem:[#allocation5 + $0xc0] sm:$0xff]
    %v130 = vld [vmem:[#allocation5 + $0xc8] sm:$0xff]
    %v131 = vld [vmem:[#allocation5 + $0xd0] sm:$0xff]
    %v132 = vld [vmem:[#allocation5 + $0xd8] sm:$0xff]
    %v133 = vld [vmem:[#allocation5 + $0xe0] sm:$0xff]
    %v134 = vld [vmem:[#allocation5 + $0xe8] sm:$0xff]
    %v135 = vld [vmem:[#allocation5 + $0xf0] sm:$0xff]
    %v136 = vld [vmem:[#allocation5 + $0xf8] sm:$0xff]
    %v137 = vld [vmem:[#allocation7] sm:$0xf]
    %v139 = vlaneseq
    %v140 = vshrl.u32 %v139, 7
    %v141 = vsub.s32 0, %v140
    %v142 = vrot.slane %v137, %v141
    %v143 = vlaneseq
    %v144 = vshrl.u32 %v143, 7
    %v145 = vsub.s32 1, %v144
    %v146 = vrot.slane %v137, %v145
    %v147 = vlaneseq
    %v148 = vshrl.u32 %v147, 7
    %v149 = vsub.s32 2, %v148
    %v150 = vrot.slane %v137, %v149
    %v151 = vlaneseq
    %v152 = vshrl.u32 %v151, 7
    %v153 = vsub.s32 3, %v152
    %v154 = vrot.slane %v137, %v153
    %v191 = vunpack.c.l.b16 %v105
    %v192 = vunpack.c.h.b16 %v105
    %v193 = vunpack.c.l.b16 %v106
    %v194 = vunpack.c.h.b16 %v106
    %v195 = vunpack.c.l.b16 %v107
    %v196 = vunpack.c.h.b16 %v107
    %v197 = vunpack.c.l.b16 %v108
    %v198 = vunpack.c.h.b16 %v108
    %v199 = vunpack.c.l.b16 %v109
    %v200 = vunpack.c.h.b16 %v109
    %v201 = vunpack.c.l.b16 %v110
    %v202 = vunpack.c.h.b16 %v110
    %v203 = vunpack.c.l.b16 %v111
    %v204 = vunpack.c.h.b16 %v111
    %v205 = vunpack.c.l.b16 %v112
    %v206 = vunpack.c.h.b16 %v112
    %v207 = vunpack.c.l.b16 %v113
    %v208 = vunpack.c.h.b16 %v113
    %v209 = vunpack.c.l.b16 %v114
    %v210 = vunpack.c.h.b16 %v114
    %v211 = vunpack.c.l.b16 %v115
    %v212 = vunpack.c.h.b16 %v115
    %v213 = vunpack.c.l.b16 %v116
    %v214 = vunpack.c.h.b16 %v116
    %v215 = vunpack.c.l.b16 %v117
    %v216 = vunpack.c.h.b16 %v117
    %v217 = vunpack.c.l.b16 %v118
    %v218 = vunpack.c.h.b16 %v118
    %v219 = vunpack.c.l.b16 %v119
    %v220 = vunpack.c.h.b16 %v119
    %v221 = vunpack.c.l.b16 %v120
    %v222 = vunpack.c.h.b16 %v120
    %v223 = vunpack.c.l.b16 %v121
    %v224 = vunpack.c.h.b16 %v121
    %v225 = vunpack.c.l.b16 %v122
    %v226 = vunpack.c.h.b16 %v122
    %v227 = vunpack.c.l.b16 %v123
    %v228 = vunpack.c.h.b16 %v123
    %v229 = vunpack.c.l.b16 %v124
    %v230 = vunpack.c.h.b16 %v124
    %v231 = vunpack.c.l.b16 %v125
    %v232 = vunpack.c.h.b16 %v125
    %v233 = vunpack.c.l.b16 %v126
    %v234 = vunpack.c.h.b16 %v126
    %v235 = vunpack.c.l.b16 %v127
    %v236 = vunpack.c.h.b16 %v127
    %v237 = vunpack.c.l.b16 %v128
    %v238 = vunpack.c.h.b16 %v128
    %v239 = vunpack.c.l.b16 %v129
    %v240 = vunpack.c.h.b16 %v129
    %v241 = vunpack.c.l.b16 %v130
    %v242 = vunpack.c.h.b16 %v130
    %v243 = vunpack.c.l.b16 %v131
    %v244 = vunpack.c.h.b16 %v131
    %v245 = vunpack.c.l.b16 %v132
    %v246 = vunpack.c.h.b16 %v132
    %v247 = vunpack.c.l.b16 %v133
    %v248 = vunpack.c.h.b16 %v133
    %v249 = vunpack.c.l.b16 %v134
    %v250 = vunpack.c.h.b16 %v134
    %v251 = vunpack.c.l.b16 %v135
    %v252 = vunpack.c.h.b16 %v135
    %v253 = vunpack.c.l.b16 %v136
    %v254 = vunpack.c.h.b16 %v136
    %v255 = vpack.c.b16 %v195, %v191
    %v256 = vpack.c.b16 %v196, %v192
    %v257 = vpack.c.b16 %v197, %v193
    %v258 = vpack.c.b16 %v198, %v194
    %v259 = vpack.c.b16 %v203, %v199
    %v260 = vpack.c.b16 %v204, %v200
    %v261 = vpack.c.b16 %v205, %v201
    %v262 = vpack.c.b16 %v206, %v202
    %v263 = vpack.c.b16 %v211, %v207
    %v264 = vpack.c.b16 %v212, %v208
    %v265 = vpack.c.b16 %v213, %v209
    %v266 = vpack.c.b16 %v214, %v210
    %v267 = vpack.c.b16 %v219, %v215
    %v268 = vpack.c.b16 %v220, %v216
    %v269 = vpack.c.b16 %v221, %v217
    %v270 = vpack.c.b16 %v222, %v218
    %v271 = vpack.c.b16 %v227, %v223
    %v272 = vpack.c.b16 %v228, %v224
    %v273 = vpack.c.b16 %v229, %v225
    %v274 = vpack.c.b16 %v230, %v226
    %v275 = vpack.c.b16 %v235, %v231
    %v276 = vpack.c.b16 %v236, %v232
    %v277 = vpack.c.b16 %v237, %v233
    %v278 = vpack.c.b16 %v238, %v234
    %v279 = vpack.c.b16 %v243, %v239
    %v280 = vpack.c.b16 %v244, %v240
    %v281 = vpack.c.b16 %v245, %v241
    %v282 = vpack.c.b16 %v246, %v242
    %v283 = vpack.c.b16 %v251, %v247
    %v284 = vpack.c.b16 %v252, %v248
    %v285 = vpack.c.b16 %v253, %v249
    %v286 = vpack.c.b16 %v254, %v250
    %319 = vmatprep.subr.bf16.mxu0 %v284
    %320 = vmatpush1.bf16.msra.mxu0 %v283
    %321 = vmatprep.subr.bf16.mxu0 %v280
    %322 = vmatpush1.bf16.msra.mxu0 %v279
    %323 = vmatprep.subr.bf16.mxu0 %v276
    %324 = vmatpush1.bf16.msra.mxu0 %v275
    %325 = vmatprep.subr.bf16.mxu0 %v272
    %326 = vmatpush1.bf16.msra.mxu0 %v271
    %327 = vmatprep.subr.bf16.mxu0 %v268
    %328 = vmatpush1.bf16.msra.mxu0 %v267
    %329 = vmatprep.subr.bf16.mxu0 %v264
    %330 = vmatpush1.bf16.msra.mxu0 %v263
    %331 = vmatprep.subr.bf16.mxu0 %v260
    %332 = vmatpush1.bf16.msra.mxu0 %v259
    %333 = vmatprep.subr.bf16.mxu0 %v256
    %334 = vmatpush1.bf16.msra.mxu0 %v255
    %335 = vmatprep.subr.bf16.mxu0 0
    %336 = vmatpush2.bf16.msra.mxu0 0
    %337 = vmatprep.subr.bf16.mxu0 0
    %338 = vmatpush2.bf16.msra.mxu0 0
    %339 = vmatprep.subr.bf16.mxu0 0
    %340 = vmatpush2.bf16.msra.mxu0 0
    %341 = vmatprep.subr.bf16.mxu0 0
    %342 = vmatpush2.bf16.msra.mxu0 0
    %343 = vmatprep.subr.bf16.mxu0 0
    %344 = vmatpush2.bf16.msra.mxu0 0
    %345 = vmatprep.subr.bf16.mxu0 0
    %346 = vmatpush2.bf16.msra.mxu0 0
    %347 = vmatprep.subr.bf16.mxu0 0
    %348 = vmatpush2.bf16.msra.mxu0 0
    %349 = vmatprep.subr.bf16.mxu0 0
    %350 = vmatpush2.bf16.msra.mxu0 0
    %351 = vmatprep.mubr.bf16.mxu0 0
    %352 = vmatmul.mubr.bf16.gmra.mxu0 %v104
    %v353 = vpop.f32.mrf.mxu0
    %v354 = vadd.f32 %v142, %v353
    %v355 = vpop.f32.mrf.mxu0
    %v356 = vadd.f32 %v146, %v355
    %v357 = vpop.f32.mrf.mxu0
    %v358 = vpop.f32.mrf.mxu0
    %359 = vdwg.mxu0
    %360 = vmatprep.subr.bf16.mxu0 %v286
    %361 = vmatpush1.bf16.msra.mxu0 %v285
    %362 = vmatprep.subr.bf16.mxu0 %v282
    %363 = vmatpush1.bf16.msra.mxu0 %v281
    %364 = vmatprep.subr.bf16.mxu0 %v278
    %365 = vmatpush1.bf16.msra.mxu0 %v277
    %366 = vmatprep.subr.bf16.mxu0 %v274
    %367 = vmatpush1.bf16.msra.mxu0 %v273
    %368 = vmatprep.subr.bf16.mxu0 %v270
    %369 = vmatpush1.bf16.msra.mxu0 %v269
    %370 = vmatprep.subr.bf16.mxu0 %v266
    %371 = vmatpush1.bf16.msra.mxu0 %v265
    %372 = vmatprep.subr.bf16.mxu0 %v262
    %373 = vmatpush1.bf16.msra.mxu0 %v261
    %374 = vmatprep.subr.bf16.mxu0 %v258
    %375 = vmatpush1.bf16.msra.mxu0 %v257
    %376 = vmatprep.subr.bf16.mxu0 0
    %377 = vmatpush2.bf16.msra.mxu0 0
    %378 = vmatprep.subr.bf16.mxu0 0
    %379 = vmatpush2.bf16.msra.mxu0 0
    %380 = vmatprep.subr.bf16.mxu0 0
    %381 = vmatpush2.bf16.msra.mxu0 0
    %382 = vmatprep.subr.bf16.mxu0 0
    %383 = vmatpush2.bf16.msra.mxu0 0
    %384 = vmatprep.subr.bf16.mxu0 0
    %385 = vmatpush2.bf16.msra.mxu0 0
    %386 = vmatprep.subr.bf16.mxu0 0
    %387 = vmatpush2.bf16.msra.mxu0 0
    %388 = vmatprep.subr.bf16.mxu0 0
    %389 = vmatpush2.bf16.msra.mxu0 0
    %390 = vmatprep.subr.bf16.mxu0 0
    %391 = vmatpush2.bf16.msra.mxu0 0
    %392 = vmatprep.mubr.bf16.mxu0 0
    %393 = vmatmul.mubr.bf16.gmra.mxu0 %v104
    %v394 = vpop.f32.mrf.mxu0
    %v395 = vadd.f32 %v150, %v394
    %v396 = vpop.f32.mrf.mxu0
    %v397 = vadd.f32 %v154, %v396
    %v398 = vpop.f32.mrf.mxu0
    %v399 = vpop.f32.mrf.mxu0
    %400 = vdwg.mxu0
    %vm401 = vcmp.ge.f32.partialorder %v354, 0.0
    %vm402 = vcmp.ge.f32.partialorder %v356, 0.0
    %vm403 = vcmp.ge.f32.partialorder %v395, 0.0
    %vm404 = vcmp.ge.f32.partialorder %v397, 0.0
    %v405 = vmul.f32 %v354, 0.2
    %v406 = vmul.f32 %v356, 0.2
    %v407 = vmul.f32 %v395, 0.2
    %v408 = vmul.f32 %v397, 0.2
    %v409 = vsel %vm401, %v354, %v405
    %v410 = vsel %vm402, %v356, %v406
    %v411 = vsel %vm403, %v395, %v407
    %v412 = vsel %vm404, %v397, %v408
    %v413 = vpack.c.bf16 %v409, %v409
    %v414 = vpack.c.bf16 %v410, %v410
    %v415 = vpack.c.bf16 %v411, %v411
    %v416 = vpack.c.bf16 %v412, %v412
    %v417 = vld [vmem:[#allocation8] sm:$0xff]
    %v418 = vld [vmem:[#allocation8 + $0x8] sm:$0xff]
    %v419 = vld [vmem:[#allocation8 + $0x10] sm:$0xff]
    %v420 = vld [vmem:[#allocation8 + $0x18] sm:$0xff]
    %v421 = vld [vmem:[#allocation8 + $0x20] sm:$0xff]
    %v422 = vld [vmem:[#allocation8 + $0x28] sm:$0xff]
    %v423 = vld [vmem:[#allocation8 + $0x30] sm:$0xff]
    %v424 = vld [vmem:[#allocation8 + $0x38] sm:$0xff]
    %v425 = vld [vmem:[#allocation8 + $0x40] sm:$0xff]
    %v426 = vld [vmem:[#allocation8 + $0x48] sm:$0xff]
    %v427 = vld [vmem:[#allocation8 + $0x50] sm:$0xff]
    %v428 = vld [vmem:[#allocation8 + $0x58] sm:$0xff]
    %v429 = vld [vmem:[#allocation8 + $0x60] sm:$0xff]
    %v430 = vld [vmem:[#allocation8 + $0x68] sm:$0xff]
    %v431 = vld [vmem:[#allocation8 + $0x70] sm:$0xff]
    %v432 = vld [vmem:[#allocation8 + $0x78] sm:$0xff]
    %v433 = vld [vmem:[#allocation8 + $0x80] sm:$0xff]
    %v434 = vld [vmem:[#allocation8 + $0x88] sm:$0xff]
    %v435 = vld [vmem:[#allocation8 + $0x90] sm:$0xff]
    %v436 = vld [vmem:[#allocation8 + $0x98] sm:$0xff]
    %v437 = vld [vmem:[#allocation8 + $0xa0] sm:$0xff]
    %v438 = vld [vmem:[#allocation8 + $0xa8] sm:$0xff]
    %v439 = vld [vmem:[#allocation8 + $0xb0] sm:$0xff]
    %v440 = vld [vmem:[#allocation8 + $0xb8] sm:$0xff]
    %v441 = vld [vmem:[#allocation8 + $0xc0] sm:$0xff]
    %v442 = vld [vmem:[#allocation8 + $0xc8] sm:$0xff]
    %v443 = vld [vmem:[#allocation8 + $0xd0] sm:$0xff]
    %v444 = vld [vmem:[#allocation8 + $0xd8] sm:$0xff]
    %v445 = vld [vmem:[#allocation8 + $0xe0] sm:$0xff]
    %v446 = vld [vmem:[#allocation8 + $0xe8] sm:$0xff]
    %v447 = vld [vmem:[#allocation8 + $0xf0] sm:$0xff]
    %v448 = vld [vmem:[#allocation8 + $0xf8] sm:$0xff]
    %v449 = vld [vmem:[#allocation8 + $0x100] sm:$0xff]
    %v450 = vld [vmem:[#allocation8 + $0x108] sm:$0xff]
    %v451 = vld [vmem:[#allocation8 + $0x110] sm:$0xff]
    %v452 = vld [vmem:[#allocation8 + $0x118] sm:$0xff]
    %v453 = vld [vmem:[#allocation8 + $0x120] sm:$0xff]
    %v454 = vld [vmem:[#allocation8 + $0x128] sm:$0xff]
    %v455 = vld [vmem:[#allocation8 + $0x130] sm:$0xff]
    %v456 = vld [vmem:[#allocation8 + $0x138] sm:$0xff]
    %v457 = vld [vmem:[#allocation8 + $0x140] sm:$0xff]
    %v458 = vld [vmem:[#allocation8 + $0x148] sm:$0xff]
    %v459 = vld [vmem:[#allocation8 + $0x150] sm:$0xff]
    %v460 = vld [vmem:[#allocation8 + $0x158] sm:$0xff]
    %v461 = vld [vmem:[#allocation8 + $0x160] sm:$0xff]
    %v462 = vld [vmem:[#allocation8 + $0x168] sm:$0xff]
    %v463 = vld [vmem:[#allocation8 + $0x170] sm:$0xff]
    %v464 = vld [vmem:[#allocation8 + $0x178] sm:$0xff]
    %v465 = vld [vmem:[#allocation8 + $0x180] sm:$0xff]
    %v466 = vld [vmem:[#allocation8 + $0x188] sm:$0xff]
    %v467 = vld [vmem:[#allocation8 + $0x190] sm:$0xff]
    %v468 = vld [vmem:[#allocation8 + $0x198] sm:$0xff]
    %v469 = vld [vmem:[#allocation8 + $0x1a0] sm:$0xff]
    %v470 = vld [vmem:[#allocation8 + $0x1a8] sm:$0xff]
    %v471 = vld [vmem:[#allocation8 + $0x1b0] sm:$0xff]
    %v472 = vld [vmem:[#allocation8 + $0x1b8] sm:$0xff]
    %v473 = vld [vmem:[#allocation8 + $0x1c0] sm:$0xff]
    %v474 = vld [vmem:[#allocation8 + $0x1c8] sm:$0xff]
    %v475 = vld [vmem:[#allocation8 + $0x1d0] sm:$0xff]
    %v476 = vld [vmem:[#allocation8 + $0x1d8] sm:$0xff]
    %v477 = vld [vmem:[#allocation8 + $0x1e0] sm:$0xff]
    %v478 = vld [vmem:[#allocation8 + $0x1e8] sm:$0xff]
    %v479 = vld [vmem:[#allocation8 + $0x1f0] sm:$0xff]
    %v480 = vld [vmem:[#allocation8 + $0x1f8] sm:$0xff]
    %v481 = vld [vmem:[#allocation8 + $0x200] sm:$0xff]
    %v482 = vld [vmem:[#allocation8 + $0x208] sm:$0xff]
    %v483 = vld [vmem:[#allocation8 + $0x210] sm:$0xff]
    %v484 = vld [vmem:[#allocation8 + $0x218] sm:$0xff]
    %v485 = vld [vmem:[#allocation8 + $0x220] sm:$0xff]
    %v486 = vld [vmem:[#allocation8 + $0x228] sm:$0xff]
    %v487 = vld [vmem:[#allocation8 + $0x230] sm:$0xff]
    %v488 = vld [vmem:[#allocation8 + $0x238] sm:$0xff]
    %v489 = vld [vmem:[#allocation8 + $0x240] sm:$0xff]
    %v490 = vld [vmem:[#allocation8 + $0x248] sm:$0xff]
    %v491 = vld [vmem:[#allocation8 + $0x250] sm:$0xff]
    %v492 = vld [vmem:[#allocation8 + $0x258] sm:$0xff]
    %v493 = vld [vmem:[#allocation8 + $0x260] sm:$0xff]
    %v494 = vld [vmem:[#allocation8 + $0x268] sm:$0xff]
    %v495 = vld [vmem:[#allocation8 + $0x270] sm:$0xff]
    %v496 = vld [vmem:[#allocation8 + $0x278] sm:$0xff]
    %v497 = vld [vmem:[#allocation8 + $0x280] sm:$0xff]
    %v498 = vld [vmem:[#allocation8 + $0x288] sm:$0xff]
    %v499 = vld [vmem:[#allocation8 + $0x290] sm:$0xff]
    %v500 = vld [vmem:[#allocation8 + $0x298] sm:$0xff]
    %v501 = vld [vmem:[#allocation8 + $0x2a0] sm:$0xff]
    %v502 = vld [vmem:[#allocation8 + $0x2a8] sm:$0xff]
    %v503 = vld [vmem:[#allocation8 + $0x2b0] sm:$0xff]
    %v504 = vld [vmem:[#allocation8 + $0x2b8] sm:$0xff]
    %v505 = vld [vmem:[#allocation8 + $0x2c0] sm:$0xff]
    %v506 = vld [vmem:[#allocation8 + $0x2c8] sm:$0xff]
    %v507 = vld [vmem:[#allocation8 + $0x2d0] sm:$0xff]
    %v508 = vld [vmem:[#allocation8 + $0x2d8] sm:$0xff]
    %v509 = vld [vmem:[#allocation8 + $0x2e0] sm:$0xff]
    %v510 = vld [vmem:[#allocation8 + $0x2e8] sm:$0xff]
    %v511 = vld [vmem:[#allocation8 + $0x2f0] sm:$0xff]
    %v512 = vld [vmem:[#allocation8 + $0x2f8] sm:$0xff]
    %v513 = vld [vmem:[#allocation8 + $0x300] sm:$0xff]
    %v514 = vld [vmem:[#allocation8 + $0x308] sm:$0xff]
    %v515 = vld [vmem:[#allocation8 + $0x310] sm:$0xff]
    %v516 = vld [vmem:[#allocation8 + $0x318] sm:$0xff]
    %v517 = vld [vmem:[#allocation8 + $0x320] sm:$0xff]
    %v518 = vld [vmem:[#allocation8 + $0x328] sm:$0xff]
    %v519 = vld [vmem:[#allocation8 + $0x330] sm:$0xff]
    %v520 = vld [vmem:[#allocation8 + $0x338] sm:$0xff]
    %v521 = vld [vmem:[#allocation8 + $0x340] sm:$0xff]
    %v522 = vld [vmem:[#allocation8 + $0x348] sm:$0xff]
    %v523 = vld [vmem:[#allocation8 + $0x350] sm:$0xff]
    %v524 = vld [vmem:[#allocation8 + $0x358] sm:$0xff]
    %v525 = vld [vmem:[#allocation8 + $0x360] sm:$0xff]
    %v526 = vld [vmem:[#allocation8 + $0x368] sm:$0xff]
    %v527 = vld [vmem:[#allocation8 + $0x370] sm:$0xff]
    %v528 = vld [vmem:[#allocation8 + $0x378] sm:$0xff]
    %v529 = vld [vmem:[#allocation8 + $0x380] sm:$0xff]
    %v530 = vld [vmem:[#allocation8 + $0x388] sm:$0xff]
    %v531 = vld [vmem:[#allocation8 + $0x390] sm:$0xff]
    %v532 = vld [vmem:[#allocation8 + $0x398] sm:$0xff]
    %v533 = vld [vmem:[#allocation8 + $0x3a0] sm:$0xff]
    %v534 = vld [vmem:[#allocation8 + $0x3a8] sm:$0xff]
    %v535 = vld [vmem:[#allocation8 + $0x3b0] sm:$0xff]
    %v536 = vld [vmem:[#allocation8 + $0x3b8] sm:$0xff]
    %v537 = vld [vmem:[#allocation8 + $0x3c0] sm:$0xff]
    %v538 = vld [vmem:[#allocation8 + $0x3c8] sm:$0xff]
    %v539 = vld [vmem:[#allocation8 + $0x3d0] sm:$0xff]
    %v540 = vld [vmem:[#allocation8 + $0x3d8] sm:$0xff]
    %v541 = vld [vmem:[#allocation8 + $0x3e0] sm:$0xff]
    %v542 = vld [vmem:[#allocation8 + $0x3e8] sm:$0xff]
    %v543 = vld [vmem:[#allocation8 + $0x3f0] sm:$0xff]
    %v544 = vld [vmem:[#allocation8 + $0x3f8] sm:$0xff]
    %v545 = vld [vmem:[#allocation10] sm:$0xf]
    %v547 = vlaneseq
    %v548 = vshrl.u32 %v547, 7
    %v549 = vsub.s32 0, %v548
    %v550 = vrot.slane %v545, %v549
    %v551 = vlaneseq
    %v552 = vshrl.u32 %v551, 7
    %v553 = vsub.s32 1, %v552
    %v554 = vrot.slane %v545, %v553
    %v555 = vlaneseq
    %v556 = vshrl.u32 %v555, 7
    %v557 = vsub.s32 2, %v556
    %v558 = vrot.slane %v545, %v557
    %v559 = vlaneseq
    %v560 = vshrl.u32 %v559, 7
    %v561 = vsub.s32 3, %v560
    %v562 = vrot.slane %v545, %v561
    %v695 = vunpack.c.l.b16 %v417
    %v696 = vunpack.c.h.b16 %v417
    %v697 = vunpack.c.l.b16 %v418
    %v698 = vunpack.c.h.b16 %v418
    %v699 = vunpack.c.l.b16 %v419
    %v700 = vunpack.c.h.b16 %v419
    %v701 = vunpack.c.l.b16 %v420
    %v702 = vunpack.c.h.b16 %v420
    %v703 = vunpack.c.l.b16 %v421
    %v704 = vunpack.c.h.b16 %v421
    %v705 = vunpack.c.l.b16 %v422
    %v706 = vunpack.c.h.b16 %v422
    %v707 = vunpack.c.l.b16 %v423
    %v708 = vunpack.c.h.b16 %v423
    %v709 = vunpack.c.l.b16 %v424
    %v710 = vunpack.c.h.b16 %v424
    %v711 = vunpack.c.l.b16 %v425
    %v712 = vunpack.c.h.b16 %v425
    %v713 = vunpack.c.l.b16 %v426
    %v714 = vunpack.c.h.b16 %v426
    %v715 = vunpack.c.l.b16 %v427
    %v716 = vunpack.c.h.b16 %v427
    %v717 = vunpack.c.l.b16 %v428
    %v718 = vunpack.c.h.b16 %v428
    %v719 = vunpack.c.l.b16 %v429
    %v720 = vunpack.c.h.b16 %v429
    %v721 = vunpack.c.l.b16 %v430
    %v722 = vunpack.c.h.b16 %v430
    %v723 = vunpack.c.l.b16 %v431
    %v724 = vunpack.c.h.b16 %v431
    %v725 = vunpack.c.l.b16 %v432
    %v726 = vunpack.c.h.b16 %v432
    %v727 = vunpack.c.l.b16 %v433
    %v728 = vunpack.c.h.b16 %v433
    %v729 = vunpack.c.l.b16 %v434
    %v730 = vunpack.c.h.b16 %v434
    %v731 = vunpack.c.l.b16 %v435
    %v732 = vunpack.c.h.b16 %v435
    %v733 = vunpack.c.l.b16 %v436
    %v734 = vunpack.c.h.b16 %v436
    %v735 = vunpack.c.l.b16 %v437
    %v736 = vunpack.c.h.b16 %v437
    %v737 = vunpack.c.l.b16 %v438
    %v738 = vunpack.c.h.b16 %v438
    %v739 = vunpack.c.l.b16 %v439
    %v740 = vunpack.c.h.b16 %v439
    %v741 = vunpack.c.l.b16 %v440
    %v742 = vunpack.c.h.b16 %v440
    %v743 = vunpack.c.l.b16 %v441
    %v744 = vunpack.c.h.b16 %v441
    %v745 = vunpack.c.l.b16 %v442
    %v746 = vunpack.c.h.b16 %v442
    %v747 = vunpack.c.l.b16 %v443
    %v748 = vunpack.c.h.b16 %v443
    %v749 = vunpack.c.l.b16 %v444
    %v750 = vunpack.c.h.b16 %v444
    %v751 = vunpack.c.l.b16 %v445
    %v752 = vunpack.c.h.b16 %v445
    %v753 = vunpack.c.l.b16 %v446
    %v754 = vunpack.c.h.b16 %v446
    %v755 = vunpack.c.l.b16 %v447
    %v756 = vunpack.c.h.b16 %v447
    %v757 = vunpack.c.l.b16 %v448
    %v758 = vunpack.c.h.b16 %v448
    %v759 = vunpack.c.l.b16 %v449
    %v760 = vunpack.c.h.b16 %v449
    %v761 = vunpack.c.l.b16 %v450
    %v762 = vunpack.c.h.b16 %v450
    %v763 = vunpack.c.l.b16 %v451
    %v764 = vunpack.c.h.b16 %v451
    %v765 = vunpack.c.l.b16 %v452
    %v766 = vunpack.c.h.b16 %v452
    %v767 = vunpack.c.l.b16 %v453
    %v768 = vunpack.c.h.b16 %v453
    %v769 = vunpack.c.l.b16 %v454
    %v770 = vunpack.c.h.b16 %v454
    %v771 = vunpack.c.l.b16 %v455
    %v772 = vunpack.c.h.b16 %v455
    %v773 = vunpack.c.l.b16 %v456
    %v774 = vunpack.c.h.b16 %v456
    %v775 = vunpack.c.l.b16 %v457
    %v776 = vunpack.c.h.b16 %v457
    %v777 = vunpack.c.l.b16 %v458
    %v778 = vunpack.c.h.b16 %v458
    %v779 = vunpack.c.l.b16 %v459
    %v780 = vunpack.c.h.b16 %v459
    %v781 = vunpack.c.l.b16 %v460
    %v782 = vunpack.c.h.b16 %v460
    %v783 = vunpack.c.l.b16 %v461
    %v784 = vunpack.c.h.b16 %v461
    %v785 = vunpack.c.l.b16 %v462
    %v786 = vunpack.c.h.b16 %v462
    %v787 = vunpack.c.l.b16 %v463
    %v788 = vunpack.c.h.b16 %v463
    %v789 = vunpack.c.l.b16 %v464
    %v790 = vunpack.c.h.b16 %v464
    %v791 = vunpack.c.l.b16 %v465
    %v792 = vunpack.c.h.b16 %v465
    %v793 = vunpack.c.l.b16 %v466
    %v794 = vunpack.c.h.b16 %v466
    %v795 = vunpack.c.l.b16 %v467
    %v796 = vunpack.c.h.b16 %v467
    %v797 = vunpack.c.l.b16 %v468
    %v798 = vunpack.c.h.b16 %v468
    %v799 = vunpack.c.l.b16 %v469
    %v800 = vunpack.c.h.b16 %v469
    %v801 = vunpack.c.l.b16 %v470
    %v802 = vunpack.c.h.b16 %v470
    %v803 = vunpack.c.l.b16 %v471
    %v804 = vunpack.c.h.b16 %v471
    %v805 = vunpack.c.l.b16 %v472
    %v806 = vunpack.c.h.b16 %v472
    %v807 = vunpack.c.l.b16 %v473
    %v808 = vunpack.c.h.b16 %v473
    %v809 = vunpack.c.l.b16 %v474
    %v810 = vunpack.c.h.b16 %v474
    %v811 = vunpack.c.l.b16 %v475
    %v812 = vunpack.c.h.b16 %v475
    %v813 = vunpack.c.l.b16 %v476
    %v814 = vunpack.c.h.b16 %v476
    %v815 = vunpack.c.l.b16 %v477
    %v816 = vunpack.c.h.b16 %v477
    %v817 = vunpack.c.l.b16 %v478
    %v818 = vunpack.c.h.b16 %v478
    %v819 = vunpack.c.l.b16 %v479
    %v820 = vunpack.c.h.b16 %v479
    %v821 = vunpack.c.l.b16 %v480
    %v822 = vunpack.c.h.b16 %v480
    %v823 = vunpack.c.l.b16 %v481
    %v824 = vunpack.c.h.b16 %v481
    %v825 = vunpack.c.l.b16 %v482
    %v826 = vunpack.c.h.b16 %v482
    %v827 = vunpack.c.l.b16 %v483
    %v828 = vunpack.c.h.b16 %v483
    %v829 = vunpack.c.l.b16 %v484
    %v830 = vunpack.c.h.b16 %v484
    %v831 = vunpack.c.l.b16 %v485
    %v832 = vunpack.c.h.b16 %v485
    %v833 = vunpack.c.l.b16 %v486
    %v834 = vunpack.c.h.b16 %v486
    %v835 = vunpack.c.l.b16 %v487
    %v836 = vunpack.c.h.b16 %v487
    %v837 = vunpack.c.l.b16 %v488
    %v838 = vunpack.c.h.b16 %v488
    %v839 = vunpack.c.l.b16 %v489
    %v840 = vunpack.c.h.b16 %v489
    %v841 = vunpack.c.l.b16 %v490
    %v842 = vunpack.c.h.b16 %v490
    %v843 = vunpack.c.l.b16 %v491
    %v844 = vunpack.c.h.b16 %v491
    %v845 = vunpack.c.l.b16 %v492
    %v846 = vunpack.c.h.b16 %v492
    %v847 = vunpack.c.l.b16 %v493
    %v848 = vunpack.c.h.b16 %v493
    %v849 = vunpack.c.l.b16 %v494
    %v850 = vunpack.c.h.b16 %v494
    %v851 = vunpack.c.l.b16 %v495
    %v852 = vunpack.c.h.b16 %v495
    %v853 = vunpack.c.l.b16 %v496
    %v854 = vunpack.c.h.b16 %v496
    %v855 = vunpack.c.l.b16 %v497
    %v856 = vunpack.c.h.b16 %v497
    %v857 = vunpack.c.l.b16 %v498
    %v858 = vunpack.c.h.b16 %v498
    %v859 = vunpack.c.l.b16 %v499
    %v860 = vunpack.c.h.b16 %v499
    %v861 = vunpack.c.l.b16 %v500
    %v862 = vunpack.c.h.b16 %v500
    %v863 = vunpack.c.l.b16 %v501
    %v864 = vunpack.c.h.b16 %v501
    %v865 = vunpack.c.l.b16 %v502
    %v866 = vunpack.c.h.b16 %v502
    %v867 = vunpack.c.l.b16 %v503
    %v868 = vunpack.c.h.b16 %v503
    %v869 = vunpack.c.l.b16 %v504
    %v870 = vunpack.c.h.b16 %v504
    %v871 = vunpack.c.l.b16 %v505
    %v872 = vunpack.c.h.b16 %v505
    %v873 = vunpack.c.l.b16 %v506
    %v874 = vunpack.c.h.b16 %v506
    %v875 = vunpack.c.l.b16 %v507
    %v876 = vunpack.c.h.b16 %v507
    %v877 = vunpack.c.l.b16 %v508
    %v878 = vunpack.c.h.b16 %v508
    %v879 = vunpack.c.l.b16 %v509
    %v880 = vunpack.c.h.b16 %v509
    %v881 = vunpack.c.l.b16 %v510
    %v882 = vunpack.c.h.b16 %v510
    %v883 = vunpack.c.l.b16 %v511
    %v884 = vunpack.c.h.b16 %v511
    %v885 = vunpack.c.l.b16 %v512
    %v886 = vunpack.c.h.b16 %v512
    %v887 = vunpack.c.l.b16 %v513
    %v888 = vunpack.c.h.b16 %v513
    %v889 = vunpack.c.l.b16 %v514
    %v890 = vunpack.c.h.b16 %v514
    %v891 = vunpack.c.l.b16 %v515
    %v892 = vunpack.c.h.b16 %v515
    %v893 = vunpack.c.l.b16 %v516
    %v894 = vunpack.c.h.b16 %v516
    %v895 = vunpack.c.l.b16 %v517
    %v896 = vunpack.c.h.b16 %v517
    %v897 = vunpack.c.l.b16 %v518
    %v898 = vunpack.c.h.b16 %v518
    %v899 = vunpack.c.l.b16 %v519
    %v900 = vunpack.c.h.b16 %v519
    %v901 = vunpack.c.l.b16 %v520
    %v902 = vunpack.c.h.b16 %v520
    %v903 = vunpack.c.l.b16 %v521
    %v904 = vunpack.c.h.b16 %v521
    %v905 = vunpack.c.l.b16 %v522
    %v906 = vunpack.c.h.b16 %v522
    %v907 = vunpack.c.l.b16 %v523
    %v908 = vunpack.c.h.b16 %v523
    %v909 = vunpack.c.l.b16 %v524
    %v910 = vunpack.c.h.b16 %v524
    %v911 = vunpack.c.l.b16 %v525
    %v912 = vunpack.c.h.b16 %v525
    %v913 = vunpack.c.l.b16 %v526
    %v914 = vunpack.c.h.b16 %v526
    %v915 = vunpack.c.l.b16 %v527
    %v916 = vunpack.c.h.b16 %v527
    %v917 = vunpack.c.l.b16 %v528
    %v918 = vunpack.c.h.b16 %v528
    %v919 = vunpack.c.l.b16 %v529
    %v920 = vunpack.c.h.b16 %v529
    %v921 = vunpack.c.l.b16 %v530
    %v922 = vunpack.c.h.b16 %v530
    %v923 = vunpack.c.l.b16 %v531
    %v924 = vunpack.c.h.b16 %v531
    %v925 = vunpack.c.l.b16 %v532
    %v926 = vunpack.c.h.b16 %v532
    %v927 = vunpack.c.l.b16 %v533
    %v928 = vunpack.c.h.b16 %v533
    %v929 = vunpack.c.l.b16 %v534
    %v930 = vunpack.c.h.b16 %v534
    %v931 = vunpack.c.l.b16 %v535
    %v932 = vunpack.c.h.b16 %v535
    %v933 = vunpack.c.l.b16 %v536
    %v934 = vunpack.c.h.b16 %v536
    %v935 = vunpack.c.l.b16 %v537
    %v936 = vunpack.c.h.b16 %v537
    %v937 = vunpack.c.l.b16 %v538
    %v938 = vunpack.c.h.b16 %v538
    %v939 = vunpack.c.l.b16 %v539
    %v940 = vunpack.c.h.b16 %v539
    %v941 = vunpack.c.l.b16 %v540
    %v942 = vunpack.c.h.b16 %v540
    %v943 = vunpack.c.l.b16 %v541
    %v944 = vunpack.c.h.b16 %v541
    %v945 = vunpack.c.l.b16 %v542
    %v946 = vunpack.c.h.b16 %v542
    %v947 = vunpack.c.l.b16 %v543
    %v948 = vunpack.c.h.b16 %v543
    %v949 = vunpack.c.l.b16 %v544
    %v950 = vunpack.c.h.b16 %v544
    %v951 = vpack.c.b16 %v699, %v695
    %v952 = vpack.c.b16 %v700, %v696
    %v953 = vpack.c.b16 %v701, %v697
    %v954 = vpack.c.b16 %v702, %v698
    %v955 = vpack.c.b16 %v707, %v703
    %v956 = vpack.c.b16 %v708, %v704
    %v957 = vpack.c.b16 %v709, %v705
    %v958 = vpack.c.b16 %v710, %v706
    %v959 = vpack.c.b16 %v715, %v711
    %v960 = vpack.c.b16 %v716, %v712
    %v961 = vpack.c.b16 %v717, %v713
    %v962 = vpack.c.b16 %v718, %v714
    %v963 = vpack.c.b16 %v723, %v719
    %v964 = vpack.c.b16 %v724, %v720
    %v965 = vpack.c.b16 %v725, %v721
    %v966 = vpack.c.b16 %v726, %v722
    %v967 = vpack.c.b16 %v731, %v727
    %v968 = vpack.c.b16 %v732, %v728
    %v969 = vpack.c.b16 %v733, %v729
    %v970 = vpack.c.b16 %v734, %v730
    %v971 = vpack.c.b16 %v739, %v735
    %v972 = vpack.c.b16 %v740, %v736
    %v973 = vpack.c.b16 %v741, %v737
    %v974 = vpack.c.b16 %v742, %v738
    %v975 = vpack.c.b16 %v747, %v743
    %v976 = vpack.c.b16 %v748, %v744
    %v977 = vpack.c.b16 %v749, %v745
    %v978 = vpack.c.b16 %v750, %v746
    %v979 = vpack.c.b16 %v755, %v751
    %v980 = vpack.c.b16 %v756, %v752
    %v981 = vpack.c.b16 %v757, %v753
    %v982 = vpack.c.b16 %v758, %v754
    %v983 = vpack.c.b16 %v763, %v759
    %v984 = vpack.c.b16 %v764, %v760
    %v985 = vpack.c.b16 %v765, %v761
    %v986 = vpack.c.b16 %v766, %v762
    %v987 = vpack.c.b16 %v771, %v767
    %v988 = vpack.c.b16 %v772, %v768
    %v989 = vpack.c.b16 %v773, %v769
    %v990 = vpack.c.b16 %v774, %v770
    %v991 = vpack.c.b16 %v779, %v775
    %v992 = vpack.c.b16 %v780, %v776
    %v993 = vpack.c.b16 %v781, %v777
    %v994 = vpack.c.b16 %v782, %v778
    %v995 = vpack.c.b16 %v787, %v783
    %v996 = vpack.c.b16 %v788, %v784
    %v997 = vpack.c.b16 %v789, %v785
    %v998 = vpack.c.b16 %v790, %v786
    %v999 = vpack.c.b16 %v795, %v791
    %v1000 = vpack.c.b16 %v796, %v792
    %v1001 = vpack.c.b16 %v797, %v793
    %v1002 = vpack.c.b16 %v798, %v794
    %v1003 = vpack.c.b16 %v803, %v799
    %v1004 = vpack.c.b16 %v804, %v800
    %v1005 = vpack.c.b16 %v805, %v801
    %v1006 = vpack.c.b16 %v806, %v802
    %v1007 = vpack.c.b16 %v811, %v807
    %v1008 = vpack.c.b16 %v812, %v808
    %v1009 = vpack.c.b16 %v813, %v809
    %v1010 = vpack.c.b16 %v814, %v810
    %v1011 = vpack.c.b16 %v819, %v815
    %v1012 = vpack.c.b16 %v820, %v816
    %v1013 = vpack.c.b16 %v821, %v817
    %v1014 = vpack.c.b16 %v822, %v818
    %v1015 = vpack.c.b16 %v827, %v823
    %v1016 = vpack.c.b16 %v828, %v824
    %v1017 = vpack.c.b16 %v829, %v825
    %v1018 = vpack.c.b16 %v830, %v826
    %v1019 = vpack.c.b16 %v835, %v831
    %v1020 = vpack.c.b16 %v836, %v832
    %v1021 = vpack.c.b16 %v837, %v833
    %v1022 = vpack.c.b16 %v838, %v834
    %v1023 = vpack.c.b16 %v843, %v839
    %v1024 = vpack.c.b16 %v844, %v840
    %v1025 = vpack.c.b16 %v845, %v841
    %v1026 = vpack.c.b16 %v846, %v842
    %v1027 = vpack.c.b16 %v851, %v847
    %v1028 = vpack.c.b16 %v852, %v848
    %v1029 = vpack.c.b16 %v853, %v849
    %v1030 = vpack.c.b16 %v854, %v850
    %v1031 = vpack.c.b16 %v859, %v855
    %v1032 = vpack.c.b16 %v860, %v856
    %v1033 = vpack.c.b16 %v861, %v857
    %v1034 = vpack.c.b16 %v862, %v858
    %v1035 = vpack.c.b16 %v867, %v863
    %v1036 = vpack.c.b16 %v868, %v864
    %v1037 = vpack.c.b16 %v869, %v865
    %v1038 = vpack.c.b16 %v870, %v866
    %v1039 = vpack.c.b16 %v875, %v871
    %v1040 = vpack.c.b16 %v876, %v872
    %v1041 = vpack.c.b16 %v877, %v873
    %v1042 = vpack.c.b16 %v878, %v874
    %v1043 = vpack.c.b16 %v883, %v879
    %v1044 = vpack.c.b16 %v884, %v880
    %v1045 = vpack.c.b16 %v885, %v881
    %v1046 = vpack.c.b16 %v886, %v882
    %v1047 = vpack.c.b16 %v891, %v887
    %v1048 = vpack.c.b16 %v892, %v888
    %v1049 = vpack.c.b16 %v893, %v889
    %v1050 = vpack.c.b16 %v894, %v890
    %v1051 = vpack.c.b16 %v899, %v895
    %v1052 = vpack.c.b16 %v900, %v896
    %v1053 = vpack.c.b16 %v901, %v897
    %v1054 = vpack.c.b16 %v902, %v898
    %v1055 = vpack.c.b16 %v907, %v903
    %v1056 = vpack.c.b16 %v908, %v904
    %v1057 = vpack.c.b16 %v909, %v905
    %v1058 = vpack.c.b16 %v910, %v906
    %v1059 = vpack.c.b16 %v915, %v911
    %v1060 = vpack.c.b16 %v916, %v912
    %v1061 = vpack.c.b16 %v917, %v913
    %v1062 = vpack.c.b16 %v918, %v914
    %v1063 = vpack.c.b16 %v923, %v919
    %v1064 = vpack.c.b16 %v924, %v920
    %v1065 = vpack.c.b16 %v925, %v921
    %v1066 = vpack.c.b16 %v926, %v922
    %v1067 = vpack.c.b16 %v931, %v927
    %v1068 = vpack.c.b16 %v932, %v928
    %v1069 = vpack.c.b16 %v933, %v929
    %v1070 = vpack.c.b16 %v934, %v930
    %v1071 = vpack.c.b16 %v939, %v935
    %v1072 = vpack.c.b16 %v940, %v936
    %v1073 = vpack.c.b16 %v941, %v937
    %v1074 = vpack.c.b16 %v942, %v938
    %v1075 = vpack.c.b16 %v947, %v943
    %v1076 = vpack.c.b16 %v948, %v944
    %v1077 = vpack.c.b16 %v949, %v945
    %v1078 = vpack.c.b16 %v950, %v946
    %1207 = vmatprep.subr.bf16.mxu0 %v980
    %1208 = vmatpush1.bf16.msra.mxu0 %v979
    %1209 = vmatprep.subr.bf16.mxu0 %v976
    %1210 = vmatpush1.bf16.msra.mxu0 %v975
    %1211 = vmatprep.subr.bf16.mxu0 %v972
    %1212 = vmatpush1.bf16.msra.mxu0 %v971
    %1213 = vmatprep.subr.bf16.mxu0 %v968
    %1214 = vmatpush1.bf16.msra.mxu0 %v967
    %1215 = vmatprep.subr.bf16.mxu0 %v964
    %1216 = vmatpush1.bf16.msra.mxu0 %v963
    %1217 = vmatprep.subr.bf16.mxu0 %v960
    %1218 = vmatpush1.bf16.msra.mxu0 %v959
    %1219 = vmatprep.subr.bf16.mxu0 %v956
    %1220 = vmatpush1.bf16.msra.mxu0 %v955
    %1221 = vmatprep.subr.bf16.mxu0 %v952
    %1222 = vmatpush1.bf16.msra.mxu0 %v951
    %1223 = vmatprep.subr.bf16.mxu0 %v1012
    %1224 = vmatpush2.bf16.msra.mxu0 %v1011
    %1225 = vmatprep.subr.bf16.mxu0 %v1008
    %1226 = vmatpush2.bf16.msra.mxu0 %v1007
    %1227 = vmatprep.subr.bf16.mxu0 %v1004
    %1228 = vmatpush2.bf16.msra.mxu0 %v1003
    %1229 = vmatprep.subr.bf16.mxu0 %v1000
    %1230 = vmatpush2.bf16.msra.mxu0 %v999
    %1231 = vmatprep.subr.bf16.mxu0 %v996
    %1232 = vmatpush2.bf16.msra.mxu0 %v995
    %1233 = vmatprep.subr.bf16.mxu0 %v992
    %1234 = vmatpush2.bf16.msra.mxu0 %v991
    %1235 = vmatprep.subr.bf16.mxu0 %v988
    %1236 = vmatpush2.bf16.msra.mxu0 %v987
    %1237 = vmatprep.subr.bf16.mxu0 %v984
    %1238 = vmatpush2.bf16.msra.mxu0 %v983
    %1239 = vmatprep.mubr.bf16.mxu0 %v414
    %1240 = vmatmul.mubr.bf16.gmra.mxu0 %v413
    %v1241 = vpop.f32.mrf.mxu0
    %v1242 = vadd.f32 %v550, %v1241
    %v1243 = vpop.f32.mrf.mxu0
    %v1244 = vadd.f32 %v554, %v1243
    %v1245 = vpop.f32.mrf.mxu0
    %v1246 = vpop.f32.mrf.mxu0
    %1247 = vdwg.mxu0
    %1248 = vmatprep.subr.bf16.mxu0 %v1044
    %1249 = vmatpush1.bf16.msra.mxu0 %v1043
    %1250 = vmatprep.subr.bf16.mxu0 %v1040
    %1251 = vmatpush1.bf16.msra.mxu0 %v1039
    %1252 = vmatprep.subr.bf16.mxu0 %v1036
    %1253 = vmatpush1.bf16.msra.mxu0 %v1035
    %1254 = vmatprep.subr.bf16.mxu0 %v1032
    %1255 = vmatpush1.bf16.msra.mxu0 %v1031
    %1256 = vmatprep.subr.bf16.mxu0 %v1028
    %1257 = vmatpush1.bf16.msra.mxu0 %v1027
    %1258 = vmatprep.subr.bf16.mxu0 %v1024
    %1259 = vmatpush1.bf16.msra.mxu0 %v1023
    %1260 = vmatprep.subr.bf16.mxu0 %v1020
    %1261 = vmatpush1.bf16.msra.mxu0 %v1019
    %1262 = vmatprep.subr.bf16.mxu0 %v1016
    %1263 = vmatpush1.bf16.msra.mxu0 %v1015
    %1264 = vmatprep.subr.bf16.mxu0 %v1076
    %1265 = vmatpush2.bf16.msra.mxu0 %v1075
    %1266 = vmatprep.subr.bf16.mxu0 %v1072
    %1267 = vmatpush2.bf16.msra.mxu0 %v1071
    %1268 = vmatprep.subr.bf16.mxu0 %v1068
    %1269 = vmatpush2.bf16.msra.mxu0 %v1067
    %1270 = vmatprep.subr.bf16.mxu0 %v1064
    %1271 = vmatpush2.bf16.msra.mxu0 %v1063
    %1272 = vmatprep.subr.bf16.mxu0 %v1060
    %1273 = vmatpush2.bf16.msra.mxu0 %v1059
    %1274 = vmatprep.subr.bf16.mxu0 %v1056
    %1275 = vmatpush2.bf16.msra.mxu0 %v1055
    %1276 = vmatprep.subr.bf16.mxu0 %v1052
    %1277 = vmatpush2.bf16.msra.mxu0 %v1051
    %1278 = vmatprep.subr.bf16.mxu0 %v1048
    %1279 = vmatpush2.bf16.msra.mxu0 %v1047
    %1280 = vmatprep.mubr.bf16.mxu0 %v416
    %1281 = vmatmul.mubr.bf16.gmra.mxu0 %v415
    %v1282 = vpop.f32.mrf.mxu0
    %v1283 = vadd.f32 %v1242, %v1282
    %v1284 = vpop.f32.mrf.mxu0
    %v1285 = vadd.f32 %v1244, %v1284
    %v1286 = vpop.f32.mrf.mxu0
    %v1287 = vpop.f32.mrf.mxu0
    %1288 = vdwg.mxu0
    %1289 = vmatprep.subr.bf16.mxu0 %v982
    %1290 = vmatpush1.bf16.msra.mxu0 %v981
    %1291 = vmatprep.subr.bf16.mxu0 %v978
    %1292 = vmatpush1.bf16.msra.mxu0 %v977
    %1293 = vmatprep.subr.bf16.mxu0 %v974
    %1294 = vmatpush1.bf16.msra.mxu0 %v973
    %1295 = vmatprep.subr.bf16.mxu0 %v970
    %1296 = vmatpush1.bf16.msra.mxu0 %v969
    %1297 = vmatprep.subr.bf16.mxu0 %v966
    %1298 = vmatpush1.bf16.msra.mxu0 %v965
    %1299 = vmatprep.subr.bf16.mxu0 %v962
    %1300 = vmatpush1.bf16.msra.mxu0 %v961
    %1301 = vmatprep.subr.bf16.mxu0 %v958
    %1302 = vmatpush1.bf16.msra.mxu0 %v957
    %1303 = vmatprep.subr.bf16.mxu0 %v954
    %1304 = vmatpush1.bf16.msra.mxu0 %v953
    %1305 = vmatprep.subr.bf16.mxu0 %v1014
    %1306 = vmatpush2.bf16.msra.mxu0 %v1013
    %1307 = vmatprep.subr.bf16.mxu0 %v1010
    %1308 = vmatpush2.bf16.msra.mxu0 %v1009
    %1309 = vmatprep.subr.bf16.mxu0 %v1006
    %1310 = vmatpush2.bf16.msra.mxu0 %v1005
    %1311 = vmatprep.subr.bf16.mxu0 %v1002
    %1312 = vmatpush2.bf16.msra.mxu0 %v1001
    %1313 = vmatprep.subr.bf16.mxu0 %v998
    %1314 = vmatpush2.bf16.msra.mxu0 %v997
    %1315 = vmatprep.subr.bf16.mxu0 %v994
    %1316 = vmatpush2.bf16.msra.mxu0 %v993
    %1317 = vmatprep.subr.bf16.mxu0 %v990
    %1318 = vmatpush2.bf16.msra.mxu0 %v989
    %1319 = vmatprep.subr.bf16.mxu0 %v986
    %1320 = vmatpush2.bf16.msra.mxu0 %v985
    %1321 = vmatprep.mubr.bf16.mxu0 %v414
    %1322 = vmatmul.mubr.bf16.gmra.mxu0 %v413
    %v1323 = vpop.f32.mrf.mxu0
    %v1324 = vadd.f32 %v558, %v1323
    %v1325 = vpop.f32.mrf.mxu0
    %v1326 = vadd.f32 %v562, %v1325
    %v1327 = vpop.f32.mrf.mxu0
    %v1328 = vpop.f32.mrf.mxu0
    %1329 = vdwg.mxu0
    %1330 = vmatprep.subr.bf16.mxu0 %v1046
    %1331 = vmatpush1.bf16.msra.mxu0 %v1045
    %1332 = vmatprep.subr.bf16.mxu0 %v1042
    %1333 = vmatpush1.bf16.msra.mxu0 %v1041
    %1334 = vmatprep.subr.bf16.mxu0 %v1038
    %1335 = vmatpush1.bf16.msra.mxu0 %v1037
    %1336 = vmatprep.subr.bf16.mxu0 %v1034
    %1337 = vmatpush1.bf16.msra.mxu0 %v1033
    %1338 = vmatprep.subr.bf16.mxu0 %v1030
    %1339 = vmatpush1.bf16.msra.mxu0 %v1029
    %1340 = vmatprep.subr.bf16.mxu0 %v1026
    %1341 = vmatpush1.bf16.msra.mxu0 %v1025
    %1342 = vmatprep.subr.bf16.mxu0 %v1022
    %1343 = vmatpush1.bf16.msra.mxu0 %v1021
    %1344 = vmatprep.subr.bf16.mxu0 %v1018
    %1345 = vmatpush1.bf16.msra.mxu0 %v1017
    %1346 = vmatprep.subr.bf16.mxu0 %v1078
    %1347 = vmatpush2.bf16.msra.mxu0 %v1077
    %1348 = vmatprep.subr.bf16.mxu0 %v1074
    %1349 = vmatpush2.bf16.msra.mxu0 %v1073
    %1350 = vmatprep.subr.bf16.mxu0 %v1070
    %1351 = vmatpush2.bf16.msra.mxu0 %v1069
    %1352 = vmatprep.subr.bf16.mxu0 %v1066
    %1353 = vmatpush2.bf16.msra.mxu0 %v1065
    %1354 = vmatprep.subr.bf16.mxu0 %v1062
    %1355 = vmatpush2.bf16.msra.mxu0 %v1061
    %1356 = vmatprep.subr.bf16.mxu0 %v1058
    %1357 = vmatpush2.bf16.msra.mxu0 %v1057
    %1358 = vmatprep.subr.bf16.mxu0 %v1054
    %1359 = vmatpush2.bf16.msra.mxu0 %v1053
    %1360 = vmatprep.subr.bf16.mxu0 %v1050
    %1361 = vmatpush2.bf16.msra.mxu0 %v1049
    %1362 = vmatprep.mubr.bf16.mxu0 %v416
    %1363 = vmatmul.mubr.bf16.gmra.mxu0 %v415
    %v1364 = vpop.f32.mrf.mxu0
    %v1365 = vadd.f32 %v1324, %v1364
    %v1366 = vpop.f32.mrf.mxu0
    %v1367 = vadd.f32 %v1326, %v1366
    %v1368 = vpop.f32.mrf.mxu0
    %v1369 = vpop.f32.mrf.mxu0
    %1370 = vdwg.mxu0
    %vm1371 = vcmp.ge.f32.partialorder %v1283, 0.0
    %vm1372 = vcmp.ge.f32.partialorder %v1285, 0.0
    %vm1373 = vcmp.ge.f32.partialorder %v1365, 0.0
    %vm1374 = vcmp.ge.f32.partialorder %v1367, 0.0
    %v1375 = vmul.f32 %v1283, 0.2
    %v1376 = vmul.f32 %v1285, 0.2
    %v1377 = vmul.f32 %v1365, 0.2
    %v1378 = vmul.f32 %v1367, 0.2
    %v1379 = vsel %vm1371, %v1283, %v1375
    %v1380 = vsel %vm1372, %v1285, %v1376
    %v1381 = vsel %vm1373, %v1365, %v1377
    %v1382 = vsel %vm1374, %v1367, %v1378
    %v1383 = vpack.c.bf16 %v1379, %v1379
    %v1384 = vpack.c.bf16 %v1380, %v1380
    %v1385 = vpack.c.bf16 %v1381, %v1381
    %v1386 = vpack.c.bf16 %v1382, %v1382
    %v1387 = vld [vmem:[#allocation11] sm:$0xff]
    %v1388 = vld [vmem:[#allocation11 + $0x8] sm:$0xff]
    %v1389 = vld [vmem:[#allocation11 + $0x10] sm:$0xff]
    %v1390 = vld [vmem:[#allocation11 + $0x18] sm:$0xf]
    %v1391 = vld [vmem:[#allocation11 + $0x1c] sm:$0xff]
    %v1392 = vld [vmem:[#allocation11 + $0x24] sm:$0xff]
    %v1393 = vld [vmem:[#allocation11 + $0x2c] sm:$0xff]
    %v1394 = vld [vmem:[#allocation11 + $0x34] sm:$0xf]
    %v1395 = vld [vmem:[#allocation11 + $0x38] sm:$0xff]
    %v1396 = vld [vmem:[#allocation11 + $0x40] sm:$0xff]
    %v1397 = vld [vmem:[#allocation11 + $0x48] sm:$0xff]
    %v1398 = vld [vmem:[#allocation11 + $0x50] sm:$0xf]
    %v1399 = vld [vmem:[#allocation11 + $0x54] sm:$0xff]
    %v1400 = vld [vmem:[#allocation11 + $0x5c] sm:$0xff]
    %v1401 = vld [vmem:[#allocation11 + $0x64] sm:$0xff]
    %v1402 = vld [vmem:[#allocation11 + $0x6c] sm:$0xf]
    %v1403 = vld [vmem:[#allocation11 + $0x70] sm:$0xff]
    %v1404 = vld [vmem:[#allocation11 + $0x78] sm:$0xff]
    %v1405 = vld [vmem:[#allocation11 + $0x80] sm:$0xff]
    %v1406 = vld [vmem:[#allocation11 + $0x88] sm:$0xf]
    %v1407 = vld [vmem:[#allocation11 + $0x8c] sm:$0xff]
    %v1408 = vld [vmem:[#allocation11 + $0x94] sm:$0xff]
    %v1409 = vld [vmem:[#allocation11 + $0x9c] sm:$0xff]
    %v1410 = vld [vmem:[#allocation11 + $0xa4] sm:$0xf]
    %v1411 = vld [vmem:[#allocation11 + $0xa8] sm:$0xff]
    %v1412 = vld [vmem:[#allocation11 + $0xb0] sm:$0xff]
    %v1413 = vld [vmem:[#allocation11 + $0xb8] sm:$0xff]
    %v1414 = vld [vmem:[#allocation11 + $0xc0] sm:$0xf]
    %v1415 = vld [vmem:[#allocation11 + $0xc4] sm:$0xff]
    %v1416 = vld [vmem:[#allocation11 + $0xcc] sm:$0xff]
    %v1417 = vld [vmem:[#allocation11 + $0xd4] sm:$0xff]
    %v1418 = vld [vmem:[#allocation11 + $0xdc] sm:$0xf]
    %v1419 = vld [vmem:[#allocation11 + $0xe0] sm:$0xff]
    %v1420 = vld [vmem:[#allocation11 + $0xe8] sm:$0xff]
    %v1421 = vld [vmem:[#allocation11 + $0xf0] sm:$0xff]
    %v1422 = vld [vmem:[#allocation11 + $0xf8] sm:$0xf]
    %v1423 = vld [vmem:[#allocation11 + $0xfc] sm:$0xff]
    %v1424 = vld [vmem:[#allocation11 + $0x104] sm:$0xff]
    %v1425 = vld [vmem:[#allocation11 + $0x10c] sm:$0xff]
    %v1426 = vld [vmem:[#allocation11 + $0x114] sm:$0xf]
    %v1427 = vld [vmem:[#allocation11 + $0x118] sm:$0xff]
    %v1428 = vld [vmem:[#allocation11 + $0x120] sm:$0xff]
    %v1429 = vld [vmem:[#allocation11 + $0x128] sm:$0xff]
    %v1430 = vld [vmem:[#allocation11 + $0x130] sm:$0xf]
    %v1431 = vld [vmem:[#allocation11 + $0x134] sm:$0xff]
    %v1432 = vld [vmem:[#allocation11 + $0x13c] sm:$0xff]
    %v1433 = vld [vmem:[#allocation11 + $0x144] sm:$0xff]
    %v1434 = vld [vmem:[#allocation11 + $0x14c] sm:$0xf]
    %v1435 = vld [vmem:[#allocation11 + $0x150] sm:$0xff]
    %v1436 = vld [vmem:[#allocation11 + $0x158] sm:$0xff]
    %v1437 = vld [vmem:[#allocation11 + $0x160] sm:$0xff]
    %v1438 = vld [vmem:[#allocation11 + $0x168] sm:$0xf]
    %v1439 = vld [vmem:[#allocation11 + $0x16c] sm:$0xff]
    %v1440 = vld [vmem:[#allocation11 + $0x174] sm:$0xff]
    %v1441 = vld [vmem:[#allocation11 + $0x17c] sm:$0xff]
    %v1442 = vld [vmem:[#allocation11 + $0x184] sm:$0xf]
    %v1443 = vld [vmem:[#allocation11 + $0x188] sm:$0xff]
    %v1444 = vld [vmem:[#allocation11 + $0x190] sm:$0xff]
    %v1445 = vld [vmem:[#allocation11 + $0x198] sm:$0xff]
    %v1446 = vld [vmem:[#allocation11 + $0x1a0] sm:$0xf]
    %v1447 = vld [vmem:[#allocation11 + $0x1a4] sm:$0xff]
    %v1448 = vld [vmem:[#allocation11 + $0x1ac] sm:$0xff]
    %v1449 = vld [vmem:[#allocation11 + $0x1b4] sm:$0xff]
    %v1450 = vld [vmem:[#allocation11 + $0x1bc] sm:$0xf]
    %v1451 = vld [vmem:[#allocation11 + $0x1c0] sm:$0xff]
    %v1452 = vld [vmem:[#allocation11 + $0x1c8] sm:$0xff]
    %v1453 = vld [vmem:[#allocation11 + $0x1d0] sm:$0xff]
    %v1454 = vld [vmem:[#allocation11 + $0x1d8] sm:$0xf]
    %v1455 = vld [vmem:[#allocation11 + $0x1dc] sm:$0xff]
    %v1456 = vld [vmem:[#allocation11 + $0x1e4] sm:$0xff]
    %v1457 = vld [vmem:[#allocation11 + $0x1ec] sm:$0xff]
    %v1458 = vld [vmem:[#allocation11 + $0x1f4] sm:$0xf]
    %v1459 = vld [vmem:[#allocation11 + $0x1f8] sm:$0xff]
    %v1460 = vld [vmem:[#allocation11 + $0x200] sm:$0xff]
    %v1461 = vld [vmem:[#allocation11 + $0x208] sm:$0xff]
    %v1462 = vld [vmem:[#allocation11 + $0x210] sm:$0xf]
    %v1463 = vld [vmem:[#allocation11 + $0x214] sm:$0xff]
    %v1464 = vld [vmem:[#allocation11 + $0x21c] sm:$0xff]
    %v1465 = vld [vmem:[#allocation11 + $0x224] sm:$0xff]
    %v1466 = vld [vmem:[#allocation11 + $0x22c] sm:$0xf]
    %v1467 = vld [vmem:[#allocation11 + $0x230] sm:$0xff]
    %v1468 = vld [vmem:[#allocation11 + $0x238] sm:$0xff]
    %v1469 = vld [vmem:[#allocation11 + $0x240] sm:$0xff]
    %v1470 = vld [vmem:[#allocation11 + $0x248] sm:$0xf]
    %v1471 = vld [vmem:[#allocation11 + $0x24c] sm:$0xff]
    %v1472 = vld [vmem:[#allocation11 + $0x254] sm:$0xff]
    %v1473 = vld [vmem:[#allocation11 + $0x25c] sm:$0xff]
    %v1474 = vld [vmem:[#allocation11 + $0x264] sm:$0xf]
    %v1475 = vld [vmem:[#allocation11 + $0x268] sm:$0xff]
    %v1476 = vld [vmem:[#allocation11 + $0x270] sm:$0xff]
    %v1477 = vld [vmem:[#allocation11 + $0x278] sm:$0xff]
    %v1478 = vld [vmem:[#allocation11 + $0x280] sm:$0xf]
    %v1479 = vld [vmem:[#allocation11 + $0x284] sm:$0xff]
    %v1480 = vld [vmem:[#allocation11 + $0x28c] sm:$0xff]
    %v1481 = vld [vmem:[#allocation11 + $0x294] sm:$0xff]
    %v1482 = vld [vmem:[#allocation11 + $0x29c] sm:$0xf]
    %v1483 = vld [vmem:[#allocation11 + $0x2a0] sm:$0xff]
    %v1484 = vld [vmem:[#allocation11 + $0x2a8] sm:$0xff]
    %v1485 = vld [vmem:[#allocation11 + $0x2b0] sm:$0xff]
    %v1486 = vld [vmem:[#allocation11 + $0x2b8] sm:$0xf]
    %v1487 = vld [vmem:[#allocation11 + $0x2bc] sm:$0xff]
    %v1488 = vld [vmem:[#allocation11 + $0x2c4] sm:$0xff]
    %v1489 = vld [vmem:[#allocation11 + $0x2cc] sm:$0xff]
    %v1490 = vld [vmem:[#allocation11 + $0x2d4] sm:$0xf]
    %v1491 = vld [vmem:[#allocation11 + $0x2d8] sm:$0xff]
    %v1492 = vld [vmem:[#allocation11 + $0x2e0] sm:$0xff]
    %v1493 = vld [vmem:[#allocation11 + $0x2e8] sm:$0xff]
    %v1494 = vld [vmem:[#allocation11 + $0x2f0] sm:$0xf]
    %v1495 = vld [vmem:[#allocation11 + $0x2f4] sm:$0xff]
    %v1496 = vld [vmem:[#allocation11 + $0x2fc] sm:$0xff]
    %v1497 = vld [vmem:[#allocation11 + $0x304] sm:$0xff]
    %v1498 = vld [vmem:[#allocation11 + $0x30c] sm:$0xf]
    %v1499 = vld [vmem:[#allocation11 + $0x310] sm:$0xff]
    %v1500 = vld [vmem:[#allocation11 + $0x318] sm:$0xff]
    %v1501 = vld [vmem:[#allocation11 + $0x320] sm:$0xff]
    %v1502 = vld [vmem:[#allocation11 + $0x328] sm:$0xf]
    %v1503 = vld [vmem:[#allocation11 + $0x32c] sm:$0xff]
    %v1504 = vld [vmem:[#allocation11 + $0x334] sm:$0xff]
    %v1505 = vld [vmem:[#allocation11 + $0x33c] sm:$0xff]
    %v1506 = vld [vmem:[#allocation11 + $0x344] sm:$0xf]
    %v1507 = vld [vmem:[#allocation11 + $0x348] sm:$0xff]
    %v1508 = vld [vmem:[#allocation11 + $0x350] sm:$0xff]
    %v1509 = vld [vmem:[#allocation11 + $0x358] sm:$0xff]
    %v1510 = vld [vmem:[#allocation11 + $0x360] sm:$0xf]
    %v1511 = vld [vmem:[#allocation11 + $0x364] sm:$0xff]
    %v1512 = vld [vmem:[#allocation11 + $0x36c] sm:$0xff]
    %v1513 = vld [vmem:[#allocation11 + $0x374] sm:$0xff]
    %v1514 = vld [vmem:[#allocation11 + $0x37c] sm:$0xf]
    %v1515 = vld [vmem:[#allocation11 + $0x380] sm:$0xff]
    %v1516 = vld [vmem:[#allocation11 + $0x388] sm:$0xff]
    %v1517 = vld [vmem:[#allocation11 + $0x390] sm:$0xff]
    %v1518 = vld [vmem:[#allocation11 + $0x398] sm:$0xf]
    %v1519 = vld [vmem:[#allocation11 + $0x39c] sm:$0xff]
    %v1520 = vld [vmem:[#allocation11 + $0x3a4] sm:$0xff]
    %v1521 = vld [vmem:[#allocation11 + $0x3ac] sm:$0xff]
    %v1522 = vld [vmem:[#allocation11 + $0x3b4] sm:$0xf]
    %v1523 = vld [vmem:[#allocation11 + $0x3b8] sm:$0xff]
    %v1524 = vld [vmem:[#allocation11 + $0x3c0] sm:$0xff]
    %v1525 = vld [vmem:[#allocation11 + $0x3c8] sm:$0xff]
    %v1526 = vld [vmem:[#allocation11 + $0x3d0] sm:$0xf]
    %v1527 = vld [vmem:[#allocation11 + $0x3d4] sm:$0xff]
    %v1528 = vld [vmem:[#allocation11 + $0x3dc] sm:$0xff]
    %v1529 = vld [vmem:[#allocation11 + $0x3e4] sm:$0xff]
    %v1530 = vld [vmem:[#allocation11 + $0x3ec] sm:$0xf]
    %v1531 = vld [vmem:[#allocation11 + $0x3f0] sm:$0xff]
    %v1532 = vld [vmem:[#allocation11 + $0x3f8] sm:$0xff]
    %v1533 = vld [vmem:[#allocation11 + $0x400] sm:$0xff]
    %v1534 = vld [vmem:[#allocation11 + $0x408] sm:$0xf]
    %v1535 = vld [vmem:[#allocation11 + $0x40c] sm:$0xff]
    %v1536 = vld [vmem:[#allocation11 + $0x414] sm:$0xff]
    %v1537 = vld [vmem:[#allocation11 + $0x41c] sm:$0xff]
    %v1538 = vld [vmem:[#allocation11 + $0x424] sm:$0xf]
    %v1539 = vld [vmem:[#allocation11 + $0x428] sm:$0xff]
    %v1540 = vld [vmem:[#allocation11 + $0x430] sm:$0xff]
    %v1541 = vld [vmem:[#allocation11 + $0x438] sm:$0xff]
    %v1542 = vld [vmem:[#allocation11 + $0x440] sm:$0xf]
    %v1543 = vld [vmem:[#allocation11 + $0x444] sm:$0xff]
    %v1544 = vld [vmem:[#allocation11 + $0x44c] sm:$0xff]
    %v1545 = vld [vmem:[#allocation11 + $0x454] sm:$0xff]
    %v1546 = vld [vmem:[#allocation11 + $0x45c] sm:$0xf]
    %v1547 = vld [vmem:[#allocation11 + $0x460] sm:$0xff]
    %v1548 = vld [vmem:[#allocation11 + $0x468] sm:$0xff]
    %v1549 = vld [vmem:[#allocation11 + $0x470] sm:$0xff]
    %v1550 = vld [vmem:[#allocation11 + $0x478] sm:$0xf]
    %v1551 = vld [vmem:[#allocation11 + $0x47c] sm:$0xff]
    %v1552 = vld [vmem:[#allocation11 + $0x484] sm:$0xff]
    %v1553 = vld [vmem:[#allocation11 + $0x48c] sm:$0xff]
    %v1554 = vld [vmem:[#allocation11 + $0x494] sm:$0xf]
    %v1555 = vld [vmem:[#allocation11 + $0x498] sm:$0xff]
    %v1556 = vld [vmem:[#allocation11 + $0x4a0] sm:$0xff]
    %v1557 = vld [vmem:[#allocation11 + $0x4a8] sm:$0xff]
    %v1558 = vld [vmem:[#allocation11 + $0x4b0] sm:$0xf]
    %v1559 = vld [vmem:[#allocation11 + $0x4b4] sm:$0xff]
    %v1560 = vld [vmem:[#allocation11 + $0x4bc] sm:$0xff]
    %v1561 = vld [vmem:[#allocation11 + $0x4c4] sm:$0xff]
    %v1562 = vld [vmem:[#allocation11 + $0x4cc] sm:$0xf]
    %v1563 = vld [vmem:[#allocation11 + $0x4d0] sm:$0xff]
    %v1564 = vld [vmem:[#allocation11 + $0x4d8] sm:$0xff]
    %v1565 = vld [vmem:[#allocation11 + $0x4e0] sm:$0xff]
    %v1566 = vld [vmem:[#allocation11 + $0x4e8] sm:$0xf]
    %v1567 = vld [vmem:[#allocation11 + $0x4ec] sm:$0xff]
    %v1568 = vld [vmem:[#allocation11 + $0x4f4] sm:$0xff]
    %v1569 = vld [vmem:[#allocation11 + $0x4fc] sm:$0xff]
    %v1570 = vld [vmem:[#allocation11 + $0x504] sm:$0xf]
    %v1571 = vld [vmem:[#allocation11 + $0x508] sm:$0xff]
    %v1572 = vld [vmem:[#allocation11 + $0x510] sm:$0xff]
    %v1573 = vld [vmem:[#allocation11 + $0x518] sm:$0xff]
    %v1574 = vld [vmem:[#allocation11 + $0x520] sm:$0xf]
    %v1575 = vld [vmem:[#allocation11 + $0x524] sm:$0xff]
    %v1576 = vld [vmem:[#allocation11 + $0x52c] sm:$0xff]
    %v1577 = vld [vmem:[#allocation11 + $0x534] sm:$0xff]
    %v1578 = vld [vmem:[#allocation11 + $0x53c] sm:$0xf]
    %v1579 = vld [vmem:[#allocation11 + $0x540] sm:$0xff]
    %v1580 = vld [vmem:[#allocation11 + $0x548] sm:$0xff]
    %v1581 = vld [vmem:[#allocation11 + $0x550] sm:$0xff]
    %v1582 = vld [vmem:[#allocation11 + $0x558] sm:$0xf]
    %v1583 = vld [vmem:[#allocation11 + $0x55c] sm:$0xff]
    %v1584 = vld [vmem:[#allocation11 + $0x564] sm:$0xff]
    %v1585 = vld [vmem:[#allocation11 + $0x56c] sm:$0xff]
    %v1586 = vld [vmem:[#allocation11 + $0x574] sm:$0xf]
    %v1587 = vld [vmem:[#allocation11 + $0x578] sm:$0xff]
    %v1588 = vld [vmem:[#allocation11 + $0x580] sm:$0xff]
    %v1589 = vld [vmem:[#allocation11 + $0x588] sm:$0xff]
    %v1590 = vld [vmem:[#allocation11 + $0x590] sm:$0xf]
    %v1591 = vld [vmem:[#allocation11 + $0x594] sm:$0xff]
    %v1592 = vld [vmem:[#allocation11 + $0x59c] sm:$0xff]
    %v1593 = vld [vmem:[#allocation11 + $0x5a4] sm:$0xff]
    %v1594 = vld [vmem:[#allocation11 + $0x5ac] sm:$0xf]
    %v1595 = vld [vmem:[#allocation11 + $0x5b0] sm:$0xff]
    %v1596 = vld [vmem:[#allocation11 + $0x5b8] sm:$0xff]
    %v1597 = vld [vmem:[#allocation11 + $0x5c0] sm:$0xff]
    %v1598 = vld [vmem:[#allocation11 + $0x5c8] sm:$0xf]
    %v1599 = vld [vmem:[#allocation11 + $0x5cc] sm:$0xff]
    %v1600 = vld [vmem:[#allocation11 + $0x5d4] sm:$0xff]
    %v1601 = vld [vmem:[#allocation11 + $0x5dc] sm:$0xff]
    %v1602 = vld [vmem:[#allocation11 + $0x5e4] sm:$0xf]
    %v1603 = vld [vmem:[#allocation11 + $0x5e8] sm:$0xff]
    %v1604 = vld [vmem:[#allocation11 + $0x5f0] sm:$0xff]
    %v1605 = vld [vmem:[#allocation11 + $0x5f8] sm:$0xff]
    %v1606 = vld [vmem:[#allocation11 + $0x600] sm:$0xf]
    %v1607 = vld [vmem:[#allocation11 + $0x604] sm:$0xff]
    %v1608 = vld [vmem:[#allocation11 + $0x60c] sm:$0xff]
    %v1609 = vld [vmem:[#allocation11 + $0x614] sm:$0xff]
    %v1610 = vld [vmem:[#allocation11 + $0x61c] sm:$0xf]
    %v1611 = vld [vmem:[#allocation11 + $0x620] sm:$0xff]
    %v1612 = vld [vmem:[#allocation11 + $0x628] sm:$0xff]
    %v1613 = vld [vmem:[#allocation11 + $0x630] sm:$0xff]
    %v1614 = vld [vmem:[#allocation11 + $0x638] sm:$0xf]
    %v1615 = vld [vmem:[#allocation11 + $0x63c] sm:$0xff]
    %v1616 = vld [vmem:[#allocation11 + $0x644] sm:$0xff]
    %v1617 = vld [vmem:[#allocation11 + $0x64c] sm:$0xff]
    %v1618 = vld [vmem:[#allocation11 + $0x654] sm:$0xf]
    %v1619 = vld [vmem:[#allocation11 + $0x658] sm:$0xff]
    %v1620 = vld [vmem:[#allocation11 + $0x660] sm:$0xff]
    %v1621 = vld [vmem:[#allocation11 + $0x668] sm:$0xff]
    %v1622 = vld [vmem:[#allocation11 + $0x670] sm:$0xf]
    %v1623 = vld [vmem:[#allocation11 + $0x674] sm:$0xff]
    %v1624 = vld [vmem:[#allocation11 + $0x67c] sm:$0xff]
    %v1625 = vld [vmem:[#allocation11 + $0x684] sm:$0xff]
    %v1626 = vld [vmem:[#allocation11 + $0x68c] sm:$0xf]
    %v1627 = vld [vmem:[#allocation11 + $0x690] sm:$0xff]
    %v1628 = vld [vmem:[#allocation11 + $0x698] sm:$0xff]
    %v1629 = vld [vmem:[#allocation11 + $0x6a0] sm:$0xff]
    %v1630 = vld [vmem:[#allocation11 + $0x6a8] sm:$0xf]
    %v1631 = vld [vmem:[#allocation11 + $0x6ac] sm:$0xff]
    %v1632 = vld [vmem:[#allocation11 + $0x6b4] sm:$0xff]
    %v1633 = vld [vmem:[#allocation11 + $0x6bc] sm:$0xff]
    %v1634 = vld [vmem:[#allocation11 + $0x6c4] sm:$0xf]
    %v1635 = vld [vmem:[#allocation11 + $0x6c8] sm:$0xff]
    %v1636 = vld [vmem:[#allocation11 + $0x6d0] sm:$0xff]
    %v1637 = vld [vmem:[#allocation11 + $0x6d8] sm:$0xff]
    %v1638 = vld [vmem:[#allocation11 + $0x6e0] sm:$0xf]
    %v1639 = vld [vmem:[#allocation11 + $0x6e4] sm:$0xff]
    %v1640 = vld [vmem:[#allocation11 + $0x6ec] sm:$0xff]
    %v1641 = vld [vmem:[#allocation11 + $0x6f4] sm:$0xff]
    %v1642 = vld [vmem:[#allocation11 + $0x6fc] sm:$0xf]
    %v1643 = vld [vmem:[%s6] sm:$0xff]
    %v1645 = vlaneseq
    %v1646 = vshrl.u32 %v1645, 7
    %v1647 = vsub.s32 0, %v1646
    %v1648 = vrot.slane %v1643, %v1647
    %v1649 = vlaneseq
    %v1650 = vshrl.u32 %v1649, 7
    %v1651 = vsub.s32 1, %v1650
    %v1652 = vrot.slane %v1643, %v1651
    %v1653 = vlaneseq
    %v1654 = vshrl.u32 %v1653, 7
    %v1655 = vsub.s32 2, %v1654
    %v1656 = vrot.slane %v1643, %v1655
    %v1657 = vlaneseq
    %v1658 = vshrl.u32 %v1657, 7
    %v1659 = vsub.s32 3, %v1658
    %v1660 = vrot.slane %v1643, %v1659
    %v1661 = vlaneseq
    %v1662 = vshrl.u32 %v1661, 7
    %v1663 = vsub.s32 4, %v1662
    %v1664 = vrot.slane %v1643, %v1663
    %v1665 = vlaneseq
    %v1666 = vshrl.u32 %v1665, 7
    %v1667 = vsub.s32 5, %v1666
    %v1668 = vrot.slane %v1643, %v1667
    %v1669 = vlaneseq
    %v1670 = vshrl.u32 %v1669, 7
    %v1671 = vsub.s32 6, %v1670
    %v1672 = vrot.slane %v1643, %v1671
    %v1936 = vunpack.c.l.b16 %v1387
    %v1937 = vunpack.c.h.b16 %v1387
    %v1938 = vunpack.c.l.b16 %v1388
    %v1939 = vunpack.c.h.b16 %v1388
    %v1940 = vunpack.c.l.b16 %v1389
    %v1941 = vunpack.c.h.b16 %v1389
    %v1942 = vunpack.c.l.b16 %v1390
    %v1943 = vunpack.c.l.b16 %v1391
    %v1944 = vunpack.c.h.b16 %v1391
    %v1945 = vunpack.c.l.b16 %v1392
    %v1946 = vunpack.c.h.b16 %v1392
    %v1947 = vunpack.c.l.b16 %v1393
    %v1948 = vunpack.c.h.b16 %v1393
    %v1949 = vunpack.c.l.b16 %v1394
    %v1950 = vunpack.c.l.b16 %v1395
    %v1951 = vunpack.c.h.b16 %v1395
    %v1952 = vunpack.c.l.b16 %v1396
    %v1953 = vunpack.c.h.b16 %v1396
    %v1954 = vunpack.c.l.b16 %v1397
    %v1955 = vunpack.c.h.b16 %v1397
    %v1956 = vunpack.c.l.b16 %v1398
    %v1957 = vunpack.c.l.b16 %v1399
    %v1958 = vunpack.c.h.b16 %v1399
    %v1959 = vunpack.c.l.b16 %v1400
    %v1960 = vunpack.c.h.b16 %v1400
    %v1961 = vunpack.c.l.b16 %v1401
    %v1962 = vunpack.c.h.b16 %v1401
    %v1963 = vunpack.c.l.b16 %v1402
    %v1964 = vunpack.c.l.b16 %v1403
    %v1965 = vunpack.c.h.b16 %v1403
    %v1966 = vunpack.c.l.b16 %v1404
    %v1967 = vunpack.c.h.b16 %v1404
    %v1968 = vunpack.c.l.b16 %v1405
    %v1969 = vunpack.c.h.b16 %v1405
    %v1970 = vunpack.c.l.b16 %v1406
    %v1971 = vunpack.c.l.b16 %v1407
    %v1972 = vunpack.c.h.b16 %v1407
    %v1973 = vunpack.c.l.b16 %v1408
    %v1974 = vunpack.c.h.b16 %v1408
    %v1975 = vunpack.c.l.b16 %v1409
    %v1976 = vunpack.c.h.b16 %v1409
    %v1977 = vunpack.c.l.b16 %v1410
    %v1978 = vunpack.c.l.b16 %v1411
    %v1979 = vunpack.c.h.b16 %v1411
    %v1980 = vunpack.c.l.b16 %v1412
    %v1981 = vunpack.c.h.b16 %v1412
    %v1982 = vunpack.c.l.b16 %v1413
    %v1983 = vunpack.c.h.b16 %v1413
    %v1984 = vunpack.c.l.b16 %v1414
    %v1985 = vunpack.c.l.b16 %v1415
    %v1986 = vunpack.c.h.b16 %v1415
    %v1987 = vunpack.c.l.b16 %v1416
    %v1988 = vunpack.c.h.b16 %v1416
    %v1989 = vunpack.c.l.b16 %v1417
    %v1990 = vunpack.c.h.b16 %v1417
    %v1991 = vunpack.c.l.b16 %v1418
    %v1992 = vunpack.c.l.b16 %v1419
    %v1993 = vunpack.c.h.b16 %v1419
    %v1994 = vunpack.c.l.b16 %v1420
    %v1995 = vunpack.c.h.b16 %v1420
    %v1996 = vunpack.c.l.b16 %v1421
    %v1997 = vunpack.c.h.b16 %v1421
    %v1998 = vunpack.c.l.b16 %v1422
    %v1999 = vunpack.c.l.b16 %v1423
    %v2000 = vunpack.c.h.b16 %v1423
    %v2001 = vunpack.c.l.b16 %v1424
    %v2002 = vunpack.c.h.b16 %v1424
    %v2003 = vunpack.c.l.b16 %v1425
    %v2004 = vunpack.c.h.b16 %v1425
    %v2005 = vunpack.c.l.b16 %v1426
    %v2006 = vunpack.c.l.b16 %v1427
    %v2007 = vunpack.c.h.b16 %v1427
    %v2008 = vunpack.c.l.b16 %v1428
    %v2009 = vunpack.c.h.b16 %v1428
    %v2010 = vunpack.c.l.b16 %v1429
    %v2011 = vunpack.c.h.b16 %v1429
    %v2012 = vunpack.c.l.b16 %v1430
    %v2013 = vunpack.c.l.b16 %v1431
    %v2014 = vunpack.c.h.b16 %v1431
    %v2015 = vunpack.c.l.b16 %v1432
    %v2016 = vunpack.c.h.b16 %v1432
    %v2017 = vunpack.c.l.b16 %v1433
    %v2018 = vunpack.c.h.b16 %v1433
    %v2019 = vunpack.c.l.b16 %v1434
    %v2020 = vunpack.c.l.b16 %v1435
    %v2021 = vunpack.c.h.b16 %v1435
    %v2022 = vunpack.c.l.b16 %v1436
    %v2023 = vunpack.c.h.b16 %v1436
    %v2024 = vunpack.c.l.b16 %v1437
    %v2025 = vunpack.c.h.b16 %v1437
    %v2026 = vunpack.c.l.b16 %v1438
    %v2027 = vunpack.c.l.b16 %v1439
    %v2028 = vunpack.c.h.b16 %v1439
    %v2029 = vunpack.c.l.b16 %v1440
    %v2030 = vunpack.c.h.b16 %v1440
    %v2031 = vunpack.c.l.b16 %v1441
    %v2032 = vunpack.c.h.b16 %v1441
    %v2033 = vunpack.c.l.b16 %v1442
    %v2034 = vunpack.c.l.b16 %v1443
    %v2035 = vunpack.c.h.b16 %v1443
    %v2036 = vunpack.c.l.b16 %v1444
    %v2037 = vunpack.c.h.b16 %v1444
    %v2038 = vunpack.c.l.b16 %v1445
    %v2039 = vunpack.c.h.b16 %v1445
    %v2040 = vunpack.c.l.b16 %v1446
    %v2041 = vunpack.c.l.b16 %v1447
    %v2042 = vunpack.c.h.b16 %v1447
    %v2043 = vunpack.c.l.b16 %v1448
    %v2044 = vunpack.c.h.b16 %v1448
    %v2045 = vunpack.c.l.b16 %v1449
    %v2046 = vunpack.c.h.b16 %v1449
    %v2047 = vunpack.c.l.b16 %v1450
    %v2048 = vunpack.c.l.b16 %v1451
    %v2049 = vunpack.c.h.b16 %v1451
    %v2050 = vunpack.c.l.b16 %v1452
    %v2051 = vunpack.c.h.b16 %v1452
    %v2052 = vunpack.c.l.b16 %v1453
    %v2053 = vunpack.c.h.b16 %v1453
    %v2054 = vunpack.c.l.b16 %v1454
    %v2055 = vunpack.c.l.b16 %v1455
    %v2056 = vunpack.c.h.b16 %v1455
    %v2057 = vunpack.c.l.b16 %v1456
    %v2058 = vunpack.c.h.b16 %v1456
    %v2059 = vunpack.c.l.b16 %v1457
    %v2060 = vunpack.c.h.b16 %v1457
    %v2061 = vunpack.c.l.b16 %v1458
    %v2062 = vunpack.c.l.b16 %v1459
    %v2063 = vunpack.c.h.b16 %v1459
    %v2064 = vunpack.c.l.b16 %v1460
    %v2065 = vunpack.c.h.b16 %v1460
    %v2066 = vunpack.c.l.b16 %v1461
    %v2067 = vunpack.c.h.b16 %v1461
    %v2068 = vunpack.c.l.b16 %v1462
    %v2069 = vunpack.c.l.b16 %v1463
    %v2070 = vunpack.c.h.b16 %v1463
    %v2071 = vunpack.c.l.b16 %v1464
    %v2072 = vunpack.c.h.b16 %v1464
    %v2073 = vunpack.c.l.b16 %v1465
    %v2074 = vunpack.c.h.b16 %v1465
    %v2075 = vunpack.c.l.b16 %v1466
    %v2076 = vunpack.c.l.b16 %v1467
    %v2077 = vunpack.c.h.b16 %v1467
    %v2078 = vunpack.c.l.b16 %v1468
    %v2079 = vunpack.c.h.b16 %v1468
    %v2080 = vunpack.c.l.b16 %v1469
    %v2081 = vunpack.c.h.b16 %v1469
    %v2082 = vunpack.c.l.b16 %v1470
    %v2083 = vunpack.c.l.b16 %v1471
    %v2084 = vunpack.c.h.b16 %v1471
    %v2085 = vunpack.c.l.b16 %v1472
    %v2086 = vunpack.c.h.b16 %v1472
    %v2087 = vunpack.c.l.b16 %v1473
    %v2088 = vunpack.c.h.b16 %v1473
    %v2089 = vunpack.c.l.b16 %v1474
    %v2090 = vunpack.c.l.b16 %v1475
    %v2091 = vunpack.c.h.b16 %v1475
    %v2092 = vunpack.c.l.b16 %v1476
    %v2093 = vunpack.c.h.b16 %v1476
    %v2094 = vunpack.c.l.b16 %v1477
    %v2095 = vunpack.c.h.b16 %v1477
    %v2096 = vunpack.c.l.b16 %v1478
    %v2097 = vunpack.c.l.b16 %v1479
    %v2098 = vunpack.c.h.b16 %v1479
    %v2099 = vunpack.c.l.b16 %v1480
    %v2100 = vunpack.c.h.b16 %v1480
    %v2101 = vunpack.c.l.b16 %v1481
    %v2102 = vunpack.c.h.b16 %v1481
    %v2103 = vunpack.c.l.b16 %v1482
    %v2104 = vunpack.c.l.b16 %v1483
    %v2105 = vunpack.c.h.b16 %v1483
    %v2106 = vunpack.c.l.b16 %v1484
    %v2107 = vunpack.c.h.b16 %v1484
    %v2108 = vunpack.c.l.b16 %v1485
    %v2109 = vunpack.c.h.b16 %v1485
    %v2110 = vunpack.c.l.b16 %v1486
    %v2111 = vunpack.c.l.b16 %v1487
    %v2112 = vunpack.c.h.b16 %v1487
    %v2113 = vunpack.c.l.b16 %v1488
    %v2114 = vunpack.c.h.b16 %v1488
    %v2115 = vunpack.c.l.b16 %v1489
    %v2116 = vunpack.c.h.b16 %v1489
    %v2117 = vunpack.c.l.b16 %v1490
    %v2118 = vunpack.c.l.b16 %v1491
    %v2119 = vunpack.c.h.b16 %v1491
    %v2120 = vunpack.c.l.b16 %v1492
    %v2121 = vunpack.c.h.b16 %v1492
    %v2122 = vunpack.c.l.b16 %v1493
    %v2123 = vunpack.c.h.b16 %v1493
    %v2124 = vunpack.c.l.b16 %v1494
    %v2125 = vunpack.c.l.b16 %v1495
    %v2126 = vunpack.c.h.b16 %v1495
    %v2127 = vunpack.c.l.b16 %v1496
    %v2128 = vunpack.c.h.b16 %v1496
    %v2129 = vunpack.c.l.b16 %v1497
    %v2130 = vunpack.c.h.b16 %v1497
    %v2131 = vunpack.c.l.b16 %v1498
    %v2132 = vunpack.c.l.b16 %v1499
    %v2133 = vunpack.c.h.b16 %v1499
    %v2134 = vunpack.c.l.b16 %v1500
    %v2135 = vunpack.c.h.b16 %v1500
    %v2136 = vunpack.c.l.b16 %v1501
    %v2137 = vunpack.c.h.b16 %v1501
    %v2138 = vunpack.c.l.b16 %v1502
    %v2139 = vunpack.c.l.b16 %v1503
    %v2140 = vunpack.c.h.b16 %v1503
    %v2141 = vunpack.c.l.b16 %v1504
    %v2142 = vunpack.c.h.b16 %v1504
    %v2143 = vunpack.c.l.b16 %v1505
    %v2144 = vunpack.c.h.b16 %v1505
    %v2145 = vunpack.c.l.b16 %v1506
    %v2146 = vunpack.c.l.b16 %v1507
    %v2147 = vunpack.c.h.b16 %v1507
    %v2148 = vunpack.c.l.b16 %v1508
    %v2149 = vunpack.c.h.b16 %v1508
    %v2150 = vunpack.c.l.b16 %v1509
    %v2151 = vunpack.c.h.b16 %v1509
    %v2152 = vunpack.c.l.b16 %v1510
    %v2153 = vunpack.c.l.b16 %v1511
    %v2154 = vunpack.c.h.b16 %v1511
    %v2155 = vunpack.c.l.b16 %v1512
    %v2156 = vunpack.c.h.b16 %v1512
    %v2157 = vunpack.c.l.b16 %v1513
    %v2158 = vunpack.c.h.b16 %v1513
    %v2159 = vunpack.c.l.b16 %v1514
    %v2160 = vunpack.c.l.b16 %v1515
    %v2161 = vunpack.c.h.b16 %v1515
    %v2162 = vunpack.c.l.b16 %v1516
    %v2163 = vunpack.c.h.b16 %v1516
    %v2164 = vunpack.c.l.b16 %v1517
    %v2165 = vunpack.c.h.b16 %v1517
    %v2166 = vunpack.c.l.b16 %v1518
    %v2167 = vunpack.c.l.b16 %v1519
    %v2168 = vunpack.c.h.b16 %v1519
    %v2169 = vunpack.c.l.b16 %v1520
    %v2170 = vunpack.c.h.b16 %v1520
    %v2171 = vunpack.c.l.b16 %v1521
    %v2172 = vunpack.c.h.b16 %v1521
    %v2173 = vunpack.c.l.b16 %v1522
    %v2174 = vunpack.c.l.b16 %v1523
    %v2175 = vunpack.c.h.b16 %v1523
    %v2176 = vunpack.c.l.b16 %v1524
    %v2177 = vunpack.c.h.b16 %v1524
    %v2178 = vunpack.c.l.b16 %v1525
    %v2179 = vunpack.c.h.b16 %v1525
    %v2180 = vunpack.c.l.b16 %v1526
    %v2181 = vunpack.c.l.b16 %v1527
    %v2182 = vunpack.c.h.b16 %v1527
    %v2183 = vunpack.c.l.b16 %v1528
    %v2184 = vunpack.c.h.b16 %v1528
    %v2185 = vunpack.c.l.b16 %v1529
    %v2186 = vunpack.c.h.b16 %v1529
    %v2187 = vunpack.c.l.b16 %v1530
    %v2188 = vunpack.c.l.b16 %v1531
    %v2189 = vunpack.c.h.b16 %v1531
    %v2190 = vunpack.c.l.b16 %v1532
    %v2191 = vunpack.c.h.b16 %v1532
    %v2192 = vunpack.c.l.b16 %v1533
    %v2193 = vunpack.c.h.b16 %v1533
    %v2194 = vunpack.c.l.b16 %v1534
    %v2195 = vunpack.c.l.b16 %v1535
    %v2196 = vunpack.c.h.b16 %v1535
    %v2197 = vunpack.c.l.b16 %v1536
    %v2198 = vunpack.c.h.b16 %v1536
    %v2199 = vunpack.c.l.b16 %v1537
    %v2200 = vunpack.c.h.b16 %v1537
    %v2201 = vunpack.c.l.b16 %v1538
    %v2202 = vunpack.c.l.b16 %v1539
    %v2203 = vunpack.c.h.b16 %v1539
    %v2204 = vunpack.c.l.b16 %v1540
    %v2205 = vunpack.c.h.b16 %v1540
    %v2206 = vunpack.c.l.b16 %v1541
    %v2207 = vunpack.c.h.b16 %v1541
    %v2208 = vunpack.c.l.b16 %v1542
    %v2209 = vunpack.c.l.b16 %v1543
    %v2210 = vunpack.c.h.b16 %v1543
    %v2211 = vunpack.c.l.b16 %v1544
    %v2212 = vunpack.c.h.b16 %v1544
    %v2213 = vunpack.c.l.b16 %v1545
    %v2214 = vunpack.c.h.b16 %v1545
    %v2215 = vunpack.c.l.b16 %v1546
    %v2216 = vunpack.c.l.b16 %v1547
    %v2217 = vunpack.c.h.b16 %v1547
    %v2218 = vunpack.c.l.b16 %v1548
    %v2219 = vunpack.c.h.b16 %v1548
    %v2220 = vunpack.c.l.b16 %v1549
    %v2221 = vunpack.c.h.b16 %v1549
    %v2222 = vunpack.c.l.b16 %v1550
    %v2223 = vunpack.c.l.b16 %v1551
    %v2224 = vunpack.c.h.b16 %v1551
    %v2225 = vunpack.c.l.b16 %v1552
    %v2226 = vunpack.c.h.b16 %v1552
    %v2227 = vunpack.c.l.b16 %v1553
    %v2228 = vunpack.c.h.b16 %v1553
    %v2229 = vunpack.c.l.b16 %v1554
    %v2230 = vunpack.c.l.b16 %v1555
    %v2231 = vunpack.c.h.b16 %v1555
    %v2232 = vunpack.c.l.b16 %v1556
    %v2233 = vunpack.c.h.b16 %v1556
    %v2234 = vunpack.c.l.b16 %v1557
    %v2235 = vunpack.c.h.b16 %v1557
    %v2236 = vunpack.c.l.b16 %v1558
    %v2237 = vunpack.c.l.b16 %v1559
    %v2238 = vunpack.c.h.b16 %v1559
    %v2239 = vunpack.c.l.b16 %v1560
    %v2240 = vunpack.c.h.b16 %v1560
    %v2241 = vunpack.c.l.b16 %v1561
    %v2242 = vunpack.c.h.b16 %v1561
    %v2243 = vunpack.c.l.b16 %v1562
    %v2244 = vunpack.c.l.b16 %v1563
    %v2245 = vunpack.c.h.b16 %v1563
    %v2246 = vunpack.c.l.b16 %v1564
    %v2247 = vunpack.c.h.b16 %v1564
    %v2248 = vunpack.c.l.b16 %v1565
    %v2249 = vunpack.c.h.b16 %v1565
    %v2250 = vunpack.c.l.b16 %v1566
    %v2251 = vunpack.c.l.b16 %v1567
    %v2252 = vunpack.c.h.b16 %v1567
    %v2253 = vunpack.c.l.b16 %v1568
    %v2254 = vunpack.c.h.b16 %v1568
    %v2255 = vunpack.c.l.b16 %v1569
    %v2256 = vunpack.c.h.b16 %v1569
    %v2257 = vunpack.c.l.b16 %v1570
    %v2258 = vunpack.c.l.b16 %v1571
    %v2259 = vunpack.c.h.b16 %v1571
    %v2260 = vunpack.c.l.b16 %v1572
    %v2261 = vunpack.c.h.b16 %v1572
    %v2262 = vunpack.c.l.b16 %v1573
    %v2263 = vunpack.c.h.b16 %v1573
    %v2264 = vunpack.c.l.b16 %v1574
    %v2265 = vunpack.c.l.b16 %v1575
    %v2266 = vunpack.c.h.b16 %v1575
    %v2267 = vunpack.c.l.b16 %v1576
    %v2268 = vunpack.c.h.b16 %v1576
    %v2269 = vunpack.c.l.b16 %v1577
    %v2270 = vunpack.c.h.b16 %v1577
    %v2271 = vunpack.c.l.b16 %v1578
    %v2272 = vunpack.c.l.b16 %v1579
    %v2273 = vunpack.c.h.b16 %v1579
    %v2274 = vunpack.c.l.b16 %v1580
    %v2275 = vunpack.c.h.b16 %v1580
    %v2276 = vunpack.c.l.b16 %v1581
    %v2277 = vunpack.c.h.b16 %v1581
    %v2278 = vunpack.c.l.b16 %v1582
    %v2279 = vunpack.c.l.b16 %v1583
    %v2280 = vunpack.c.h.b16 %v1583
    %v2281 = vunpack.c.l.b16 %v1584
    %v2282 = vunpack.c.h.b16 %v1584
    %v2283 = vunpack.c.l.b16 %v1585
    %v2284 = vunpack.c.h.b16 %v1585
    %v2285 = vunpack.c.l.b16 %v1586
    %v2286 = vunpack.c.l.b16 %v1587
    %v2287 = vunpack.c.h.b16 %v1587
    %v2288 = vunpack.c.l.b16 %v1588
    %v2289 = vunpack.c.h.b16 %v1588
    %v2290 = vunpack.c.l.b16 %v1589
    %v2291 = vunpack.c.h.b16 %v1589
    %v2292 = vunpack.c.l.b16 %v1590
    %v2293 = vunpack.c.l.b16 %v1591
    %v2294 = vunpack.c.h.b16 %v1591
    %v2295 = vunpack.c.l.b16 %v1592
    %v2296 = vunpack.c.h.b16 %v1592
    %v2297 = vunpack.c.l.b16 %v1593
    %v2298 = vunpack.c.h.b16 %v1593
    %v2299 = vunpack.c.l.b16 %v1594
    %v2300 = vunpack.c.l.b16 %v1595
    %v2301 = vunpack.c.h.b16 %v1595
    %v2302 = vunpack.c.l.b16 %v1596
    %v2303 = vunpack.c.h.b16 %v1596
    %v2304 = vunpack.c.l.b16 %v1597
    %v2305 = vunpack.c.h.b16 %v1597
    %v2306 = vunpack.c.l.b16 %v1598
    %v2307 = vunpack.c.l.b16 %v1599
    %v2308 = vunpack.c.h.b16 %v1599
    %v2309 = vunpack.c.l.b16 %v1600
    %v2310 = vunpack.c.h.b16 %v1600
    %v2311 = vunpack.c.l.b16 %v1601
    %v2312 = vunpack.c.h.b16 %v1601
    %v2313 = vunpack.c.l.b16 %v1602
    %v2314 = vunpack.c.l.b16 %v1603
    %v2315 = vunpack.c.h.b16 %v1603
    %v2316 = vunpack.c.l.b16 %v1604
    %v2317 = vunpack.c.h.b16 %v1604
    %v2318 = vunpack.c.l.b16 %v1605
    %v2319 = vunpack.c.h.b16 %v1605
    %v2320 = vunpack.c.l.b16 %v1606
    %v2321 = vunpack.c.l.b16 %v1607
    %v2322 = vunpack.c.h.b16 %v1607
    %v2323 = vunpack.c.l.b16 %v1608
    %v2324 = vunpack.c.h.b16 %v1608
    %v2325 = vunpack.c.l.b16 %v1609
    %v2326 = vunpack.c.h.b16 %v1609
    %v2327 = vunpack.c.l.b16 %v1610
    %v2328 = vunpack.c.l.b16 %v1611
    %v2329 = vunpack.c.h.b16 %v1611
    %v2330 = vunpack.c.l.b16 %v1612
    %v2331 = vunpack.c.h.b16 %v1612
    %v2332 = vunpack.c.l.b16 %v1613
    %v2333 = vunpack.c.h.b16 %v1613
    %v2334 = vunpack.c.l.b16 %v1614
    %v2335 = vunpack.c.l.b16 %v1615
    %v2336 = vunpack.c.h.b16 %v1615
    %v2337 = vunpack.c.l.b16 %v1616
    %v2338 = vunpack.c.h.b16 %v1616
    %v2339 = vunpack.c.l.b16 %v1617
    %v2340 = vunpack.c.h.b16 %v1617
    %v2341 = vunpack.c.l.b16 %v1618
    %v2342 = vunpack.c.l.b16 %v1619
    %v2343 = vunpack.c.h.b16 %v1619
    %v2344 = vunpack.c.l.b16 %v1620
    %v2345 = vunpack.c.h.b16 %v1620
    %v2346 = vunpack.c.l.b16 %v1621
    %v2347 = vunpack.c.h.b16 %v1621
    %v2348 = vunpack.c.l.b16 %v1622
    %v2349 = vunpack.c.l.b16 %v1623
    %v2350 = vunpack.c.h.b16 %v1623
    %v2351 = vunpack.c.l.b16 %v1624
    %v2352 = vunpack.c.h.b16 %v1624
    %v2353 = vunpack.c.l.b16 %v1625
    %v2354 = vunpack.c.h.b16 %v1625
    %v2355 = vunpack.c.l.b16 %v1626
    %v2356 = vunpack.c.l.b16 %v1627
    %v2357 = vunpack.c.h.b16 %v1627
    %v2358 = vunpack.c.l.b16 %v1628
    %v2359 = vunpack.c.h.b16 %v1628
    %v2360 = vunpack.c.l.b16 %v1629
    %v2361 = vunpack.c.h.b16 %v1629
    %v2362 = vunpack.c.l.b16 %v1630
    %v2363 = vunpack.c.l.b16 %v1631
    %v2364 = vunpack.c.h.b16 %v1631
    %v2365 = vunpack.c.l.b16 %v1632
    %v2366 = vunpack.c.h.b16 %v1632
    %v2367 = vunpack.c.l.b16 %v1633
    %v2368 = vunpack.c.h.b16 %v1633
    %v2369 = vunpack.c.l.b16 %v1634
    %v2370 = vunpack.c.l.b16 %v1635
    %v2371 = vunpack.c.h.b16 %v1635
    %v2372 = vunpack.c.l.b16 %v1636
    %v2373 = vunpack.c.h.b16 %v1636
    %v2374 = vunpack.c.l.b16 %v1637
    %v2375 = vunpack.c.h.b16 %v1637
    %v2376 = vunpack.c.l.b16 %v1638
    %v2377 = vunpack.c.l.b16 %v1639
    %v2378 = vunpack.c.h.b16 %v1639
    %v2379 = vunpack.c.l.b16 %v1640
    %v2380 = vunpack.c.h.b16 %v1640
    %v2381 = vunpack.c.l.b16 %v1641
    %v2382 = vunpack.c.h.b16 %v1641
    %v2383 = vunpack.c.l.b16 %v1642
    %v2384 = vpack.c.b16 %v1943, %v1936
    %v2385 = vpack.c.b16 %v1944, %v1937
    %v2386 = vpack.c.b16 %v1945, %v1938
    %v2387 = vpack.c.b16 %v1946, %v1939
    %v2388 = vpack.c.b16 %v1947, %v1940
    %v2389 = vpack.c.b16 %v1948, %v1941
    %v2390 = vpack.c.b16 %v1949, %v1942
    %v2391 = vpack.c.b16 %v1957, %v1950
    %v2392 = vpack.c.b16 %v1958, %v1951
    %v2393 = vpack.c.b16 %v1959, %v1952
    %v2394 = vpack.c.b16 %v1960, %v1953
    %v2395 = vpack.c.b16 %v1961, %v1954
    %v2396 = vpack.c.b16 %v1962, %v1955
    %v2397 = vpack.c.b16 %v1963, %v1956
    %v2398 = vpack.c.b16 %v1971, %v1964
    %v2399 = vpack.c.b16 %v1972, %v1965
    %v2400 = vpack.c.b16 %v1973, %v1966
    %v2401 = vpack.c.b16 %v1974, %v1967
    %v2402 = vpack.c.b16 %v1975, %v1968
    %v2403 = vpack.c.b16 %v1976, %v1969
    %v2404 = vpack.c.b16 %v1977, %v1970
    %v2405 = vpack.c.b16 %v1985, %v1978
    %v2406 = vpack.c.b16 %v1986, %v1979
    %v2407 = vpack.c.b16 %v1987, %v1980
    %v2408 = vpack.c.b16 %v1988, %v1981
    %v2409 = vpack.c.b16 %v1989, %v1982
    %v2410 = vpack.c.b16 %v1990, %v1983
    %v2411 = vpack.c.b16 %v1991, %v1984
    %v2412 = vpack.c.b16 %v1999, %v1992
    %v2413 = vpack.c.b16 %v2000, %v1993
    %v2414 = vpack.c.b16 %v2001, %v1994
    %v2415 = vpack.c.b16 %v2002, %v1995
    %v2416 = vpack.c.b16 %v2003, %v1996
    %v2417 = vpack.c.b16 %v2004, %v1997
    %v2418 = vpack.c.b16 %v2005, %v1998
    %v2419 = vpack.c.b16 %v2013, %v2006
    %v2420 = vpack.c.b16 %v2014, %v2007
    %v2421 = vpack.c.b16 %v2015, %v2008
    %v2422 = vpack.c.b16 %v2016, %v2009
    %v2423 = vpack.c.b16 %v2017, %v2010
    %v2424 = vpack.c.b16 %v2018, %v2011
    %v2425 = vpack.c.b16 %v2019, %v2012
    %v2426 = vpack.c.b16 %v2027, %v2020
    %v2427 = vpack.c.b16 %v2028, %v2021
    %v2428 = vpack.c.b16 %v2029, %v2022
    %v2429 = vpack.c.b16 %v2030, %v2023
    %v2430 = vpack.c.b16 %v2031, %v2024
    %v2431 = vpack.c.b16 %v2032, %v2025
    %v2432 = vpack.c.b16 %v2033, %v2026
    %v2433 = vpack.c.b16 %v2041, %v2034
    %v2434 = vpack.c.b16 %v2042, %v2035
    %v2435 = vpack.c.b16 %v2043, %v2036
    %v2436 = vpack.c.b16 %v2044, %v2037
    %v2437 = vpack.c.b16 %v2045, %v2038
    %v2438 = vpack.c.b16 %v2046, %v2039
    %v2439 = vpack.c.b16 %v2047, %v2040
    %v2440 = vpack.c.b16 %v2055, %v2048
    %v2441 = vpack.c.b16 %v2056, %v2049
    %v2442 = vpack.c.b16 %v2057, %v2050
    %v2443 = vpack.c.b16 %v2058, %v2051
    %v2444 = vpack.c.b16 %v2059, %v2052
    %v2445 = vpack.c.b16 %v2060, %v2053
    %v2446 = vpack.c.b16 %v2061, %v2054
    %v2447 = vpack.c.b16 %v2069, %v2062
    %v2448 = vpack.c.b16 %v2070, %v2063
    %v2449 = vpack.c.b16 %v2071, %v2064
    %v2450 = vpack.c.b16 %v2072, %v2065
    %v2451 = vpack.c.b16 %v2073, %v2066
    %v2452 = vpack.c.b16 %v2074, %v2067
    %v2453 = vpack.c.b16 %v2075, %v2068
    %v2454 = vpack.c.b16 %v2083, %v2076
    %v2455 = vpack.c.b16 %v2084, %v2077
    %v2456 = vpack.c.b16 %v2085, %v2078
    %v2457 = vpack.c.b16 %v2086, %v2079
    %v2458 = vpack.c.b16 %v2087, %v2080
    %v2459 = vpack.c.b16 %v2088, %v2081
    %v2460 = vpack.c.b16 %v2089, %v2082
    %v2461 = vpack.c.b16 %v2097, %v2090
    %v2462 = vpack.c.b16 %v2098, %v2091
    %v2463 = vpack.c.b16 %v2099, %v2092
    %v2464 = vpack.c.b16 %v2100, %v2093
    %v2465 = vpack.c.b16 %v2101, %v2094
    %v2466 = vpack.c.b16 %v2102, %v2095
    %v2467 = vpack.c.b16 %v2103, %v2096
    %v2468 = vpack.c.b16 %v2111, %v2104
    %v2469 = vpack.c.b16 %v2112, %v2105
    %v2470 = vpack.c.b16 %v2113, %v2106
    %v2471 = vpack.c.b16 %v2114, %v2107
    %v2472 = vpack.c.b16 %v2115, %v2108
    %v2473 = vpack.c.b16 %v2116, %v2109
    %v2474 = vpack.c.b16 %v2117, %v2110
    %v2475 = vpack.c.b16 %v2125, %v2118
    %v2476 = vpack.c.b16 %v2126, %v2119
    %v2477 = vpack.c.b16 %v2127, %v2120
    %v2478 = vpack.c.b16 %v2128, %v2121
    %v2479 = vpack.c.b16 %v2129, %v2122
    %v2480 = vpack.c.b16 %v2130, %v2123
    %v2481 = vpack.c.b16 %v2131, %v2124
    %v2482 = vpack.c.b16 %v2139, %v2132
    %v2483 = vpack.c.b16 %v2140, %v2133
    %v2484 = vpack.c.b16 %v2141, %v2134
    %v2485 = vpack.c.b16 %v2142, %v2135
    %v2486 = vpack.c.b16 %v2143, %v2136
    %v2487 = vpack.c.b16 %v2144, %v2137
    %v2488 = vpack.c.b16 %v2145, %v2138
    %v2489 = vpack.c.b16 %v2153, %v2146
    %v2490 = vpack.c.b16 %v2154, %v2147
    %v2491 = vpack.c.b16 %v2155, %v2148
    %v2492 = vpack.c.b16 %v2156, %v2149
    %v2493 = vpack.c.b16 %v2157, %v2150
    %v2494 = vpack.c.b16 %v2158, %v2151
    %v2495 = vpack.c.b16 %v2159, %v2152
    %v2496 = vpack.c.b16 %v2167, %v2160
    %v2497 = vpack.c.b16 %v2168, %v2161
    %v2498 = vpack.c.b16 %v2169, %v2162
    %v2499 = vpack.c.b16 %v2170, %v2163
    %v2500 = vpack.c.b16 %v2171, %v2164
    %v2501 = vpack.c.b16 %v2172, %v2165
    %v2502 = vpack.c.b16 %v2173, %v2166
    %v2503 = vpack.c.b16 %v2181, %v2174
    %v2504 = vpack.c.b16 %v2182, %v2175
    %v2505 = vpack.c.b16 %v2183, %v2176
    %v2506 = vpack.c.b16 %v2184, %v2177
    %v2507 = vpack.c.b16 %v2185, %v2178
    %v2508 = vpack.c.b16 %v2186, %v2179
    %v2509 = vpack.c.b16 %v2187, %v2180
    %v2510 = vpack.c.b16 %v2195, %v2188
    %v2511 = vpack.c.b16 %v2196, %v2189
    %v2512 = vpack.c.b16 %v2197, %v2190
    %v2513 = vpack.c.b16 %v2198, %v2191
    %v2514 = vpack.c.b16 %v2199, %v2192
    %v2515 = vpack.c.b16 %v2200, %v2193
    %v2516 = vpack.c.b16 %v2201, %v2194
    %v2517 = vpack.c.b16 %v2209, %v2202
    %v2518 = vpack.c.b16 %v2210, %v2203
    %v2519 = vpack.c.b16 %v2211, %v2204
    %v2520 = vpack.c.b16 %v2212, %v2205
    %v2521 = vpack.c.b16 %v2213, %v2206
    %v2522 = vpack.c.b16 %v2214, %v2207
    %v2523 = vpack.c.b16 %v2215, %v2208
    %v2524 = vpack.c.b16 %v2223, %v2216
    %v2525 = vpack.c.b16 %v2224, %v2217
    %v2526 = vpack.c.b16 %v2225, %v2218
    %v2527 = vpack.c.b16 %v2226, %v2219
    %v2528 = vpack.c.b16 %v2227, %v2220
    %v2529 = vpack.c.b16 %v2228, %v2221
    %v2530 = vpack.c.b16 %v2229, %v2222
    %v2531 = vpack.c.b16 %v2237, %v2230
    %v2532 = vpack.c.b16 %v2238, %v2231
    %v2533 = vpack.c.b16 %v2239, %v2232
    %v2534 = vpack.c.b16 %v2240, %v2233
    %v2535 = vpack.c.b16 %v2241, %v2234
    %v2536 = vpack.c.b16 %v2242, %v2235
    %v2537 = vpack.c.b16 %v2243, %v2236
    %v2538 = vpack.c.b16 %v2251, %v2244
    %v2539 = vpack.c.b16 %v2252, %v2245
    %v2540 = vpack.c.b16 %v2253, %v2246
    %v2541 = vpack.c.b16 %v2254, %v2247
    %v2542 = vpack.c.b16 %v2255, %v2248
    %v2543 = vpack.c.b16 %v2256, %v2249
    %v2544 = vpack.c.b16 %v2257, %v2250
    %v2545 = vpack.c.b16 %v2265, %v2258
    %v2546 = vpack.c.b16 %v2266, %v2259
    %v2547 = vpack.c.b16 %v2267, %v2260
    %v2548 = vpack.c.b16 %v2268, %v2261
    %v2549 = vpack.c.b16 %v2269, %v2262
    %v2550 = vpack.c.b16 %v2270, %v2263
    %v2551 = vpack.c.b16 %v2271, %v2264
    %v2552 = vpack.c.b16 %v2279, %v2272
    %v2553 = vpack.c.b16 %v2280, %v2273
    %v2554 = vpack.c.b16 %v2281, %v2274
    %v2555 = vpack.c.b16 %v2282, %v2275
    %v2556 = vpack.c.b16 %v2283, %v2276
    %v2557 = vpack.c.b16 %v2284, %v2277
    %v2558 = vpack.c.b16 %v2285, %v2278
    %v2559 = vpack.c.b16 %v2293, %v2286
    %v2560 = vpack.c.b16 %v2294, %v2287
    %v2561 = vpack.c.b16 %v2295, %v2288
    %v2562 = vpack.c.b16 %v2296, %v2289
    %v2563 = vpack.c.b16 %v2297, %v2290
    %v2564 = vpack.c.b16 %v2298, %v2291
    %v2565 = vpack.c.b16 %v2299, %v2292
    %v2566 = vpack.c.b16 %v2307, %v2300
    %v2567 = vpack.c.b16 %v2308, %v2301
    %v2568 = vpack.c.b16 %v2309, %v2302
    %v2569 = vpack.c.b16 %v2310, %v2303
    %v2570 = vpack.c.b16 %v2311, %v2304
    %v2571 = vpack.c.b16 %v2312, %v2305
    %v2572 = vpack.c.b16 %v2313, %v2306
    %v2573 = vpack.c.b16 %v2321, %v2314
    %v2574 = vpack.c.b16 %v2322, %v2315
    %v2575 = vpack.c.b16 %v2323, %v2316
    %v2576 = vpack.c.b16 %v2324, %v2317
    %v2577 = vpack.c.b16 %v2325, %v2318
    %v2578 = vpack.c.b16 %v2326, %v2319
    %v2579 = vpack.c.b16 %v2327, %v2320
    %v2580 = vpack.c.b16 %v2335, %v2328
    %v2581 = vpack.c.b16 %v2336, %v2329
    %v2582 = vpack.c.b16 %v2337, %v2330
    %v2583 = vpack.c.b16 %v2338, %v2331
    %v2584 = vpack.c.b16 %v2339, %v2332
    %v2585 = vpack.c.b16 %v2340, %v2333
    %v2586 = vpack.c.b16 %v2341, %v2334
    %v2587 = vpack.c.b16 %v2349, %v2342
    %v2588 = vpack.c.b16 %v2350, %v2343
    %v2589 = vpack.c.b16 %v2351, %v2344
    %v2590 = vpack.c.b16 %v2352, %v2345
    %v2591 = vpack.c.b16 %v2353, %v2346
    %v2592 = vpack.c.b16 %v2354, %v2347
    %v2593 = vpack.c.b16 %v2355, %v2348
    %v2594 = vpack.c.b16 %v2363, %v2356
    %v2595 = vpack.c.b16 %v2364, %v2357
    %v2596 = vpack.c.b16 %v2365, %v2358
    %v2597 = vpack.c.b16 %v2366, %v2359
    %v2598 = vpack.c.b16 %v2367, %v2360
    %v2599 = vpack.c.b16 %v2368, %v2361
    %v2600 = vpack.c.b16 %v2369, %v2362
    %v2601 = vpack.c.b16 %v2377, %v2370
    %v2602 = vpack.c.b16 %v2378, %v2371
    %v2603 = vpack.c.b16 %v2379, %v2372
    %v2604 = vpack.c.b16 %v2380, %v2373
    %v2605 = vpack.c.b16 %v2381, %v2374
    %v2606 = vpack.c.b16 %v2382, %v2375
    %v2607 = vpack.c.b16 %v2383, %v2376
    %2832 = vmatprep.subr.bf16.mxu0 %v2434
    %2833 = vmatpush1.bf16.msra.mxu0 %v2433
    %2834 = vmatprep.subr.bf16.mxu0 %v2427
    %2835 = vmatpush1.bf16.msra.mxu0 %v2426
    %2836 = vmatprep.subr.bf16.mxu0 %v2420
    %2837 = vmatpush1.bf16.msra.mxu0 %v2419
    %2838 = vmatprep.subr.bf16.mxu0 %v2413
    %2839 = vmatpush1.bf16.msra.mxu0 %v2412
    %2840 = vmatprep.subr.bf16.mxu0 %v2406
    %2841 = vmatpush1.bf16.msra.mxu0 %v2405
    %2842 = vmatprep.subr.bf16.mxu0 %v2399
    %2843 = vmatpush1.bf16.msra.mxu0 %v2398
    %2844 = vmatprep.subr.bf16.mxu0 %v2392
    %2845 = vmatpush1.bf16.msra.mxu0 %v2391
    %2846 = vmatprep.subr.bf16.mxu0 %v2385
    %2847 = vmatpush1.bf16.msra.mxu0 %v2384
    %2848 = vmatprep.subr.bf16.mxu0 %v2490
    %2849 = vmatpush2.bf16.msra.mxu0 %v2489
    %2850 = vmatprep.subr.bf16.mxu0 %v2483
    %2851 = vmatpush2.bf16.msra.mxu0 %v2482
    %2852 = vmatprep.subr.bf16.mxu0 %v2476
    %2853 = vmatpush2.bf16.msra.mxu0 %v2475
    %2854 = vmatprep.subr.bf16.mxu0 %v2469
    %2855 = vmatpush2.bf16.msra.mxu0 %v2468
    %2856 = vmatprep.subr.bf16.mxu0 %v2462
    %2857 = vmatpush2.bf16.msra.mxu0 %v2461
    %2858 = vmatprep.subr.bf16.mxu0 %v2455
    %2859 = vmatpush2.bf16.msra.mxu0 %v2454
    %2860 = vmatprep.subr.bf16.mxu0 %v2448
    %2861 = vmatpush2.bf16.msra.mxu0 %v2447
    %2862 = vmatprep.subr.bf16.mxu0 %v2441
    %2863 = vmatpush2.bf16.msra.mxu0 %v2440
    %2864 = vmatprep.mubr.bf16.mxu0 %v1384
    %2865 = vmatmul.mubr.bf16.gmra.mxu0 %v1383
    %v2866 = vpop.f32.mrf.mxu0
    %v2867 = vadd.f32 %v1648, %v2866
    %v2868 = vpop.f32.mrf.mxu0
    %v2869 = vadd.f32 %v1652, %v2868
    %v2870 = vpop.f32.mrf.mxu0
    %v2871 = vpop.f32.mrf.mxu0
    %2872 = vdwg.mxu0
    %2873 = vmatprep.subr.bf16.mxu0 %v2546
    %2874 = vmatpush1.bf16.msra.mxu0 %v2545
    %2875 = vmatprep.subr.bf16.mxu0 %v2539
    %2876 = vmatpush1.bf16.msra.mxu0 %v2538
    %2877 = vmatprep.subr.bf16.mxu0 %v2532
    %2878 = vmatpush1.bf16.msra.mxu0 %v2531
    %2879 = vmatprep.subr.bf16.mxu0 %v2525
    %2880 = vmatpush1.bf16.msra.mxu0 %v2524
    %2881 = vmatprep.subr.bf16.mxu0 %v2518
    %2882 = vmatpush1.bf16.msra.mxu0 %v2517
    %2883 = vmatprep.subr.bf16.mxu0 %v2511
    %2884 = vmatpush1.bf16.msra.mxu0 %v2510
    %2885 = vmatprep.subr.bf16.mxu0 %v2504
    %2886 = vmatpush1.bf16.msra.mxu0 %v2503
    %2887 = vmatprep.subr.bf16.mxu0 %v2497
    %2888 = vmatpush1.bf16.msra.mxu0 %v2496
    %2889 = vmatprep.subr.bf16.mxu0 %v2602
    %2890 = vmatpush2.bf16.msra.mxu0 %v2601
    %2891 = vmatprep.subr.bf16.mxu0 %v2595
    %2892 = vmatpush2.bf16.msra.mxu0 %v2594
    %2893 = vmatprep.subr.bf16.mxu0 %v2588
    %2894 = vmatpush2.bf16.msra.mxu0 %v2587
    %2895 = vmatprep.subr.bf16.mxu0 %v2581
    %2896 = vmatpush2.bf16.msra.mxu0 %v2580
    %2897 = vmatprep.subr.bf16.mxu0 %v2574
    %2898 = vmatpush2.bf16.msra.mxu0 %v2573
    %2899 = vmatprep.subr.bf16.mxu0 %v2567
    %2900 = vmatpush2.bf16.msra.mxu0 %v2566
    %2901 = vmatprep.subr.bf16.mxu0 %v2560
    %2902 = vmatpush2.bf16.msra.mxu0 %v2559
    %2903 = vmatprep.subr.bf16.mxu0 %v2553
    %2904 = vmatpush2.bf16.msra.mxu0 %v2552
    %2905 = vmatprep.mubr.bf16.mxu0 %v1386
    %2906 = vmatmul.mubr.bf16.gmra.mxu0 %v1385
    %v2907 = vpop.f32.mrf.mxu0
    %v2908 = vadd.f32 %v2867, %v2907
    %v2909 = vpop.f32.mrf.mxu0
    %v2910 = vadd.f32 %v2869, %v2909
    %v2911 = vpop.f32.mrf.mxu0
    %v2912 = vpop.f32.mrf.mxu0
    %2913 = vdwg.mxu0
    %2914 = vmatprep.subr.bf16.mxu0 %v2436
    %2915 = vmatpush1.bf16.msra.mxu0 %v2435
    %2916 = vmatprep.subr.bf16.mxu0 %v2429
    %2917 = vmatpush1.bf16.msra.mxu0 %v2428
    %2918 = vmatprep.subr.bf16.mxu0 %v2422
    %2919 = vmatpush1.bf16.msra.mxu0 %v2421
    %2920 = vmatprep.subr.bf16.mxu0 %v2415
    %2921 = vmatpush1.bf16.msra.mxu0 %v2414
    %2922 = vmatprep.subr.bf16.mxu0 %v2408
    %2923 = vmatpush1.bf16.msra.mxu0 %v2407
    %2924 = vmatprep.subr.bf16.mxu0 %v2401
    %2925 = vmatpush1.bf16.msra.mxu0 %v2400
    %2926 = vmatprep.subr.bf16.mxu0 %v2394
    %2927 = vmatpush1.bf16.msra.mxu0 %v2393
    %2928 = vmatprep.subr.bf16.mxu0 %v2387
    %2929 = vmatpush1.bf16.msra.mxu0 %v2386
    %2930 = vmatprep.subr.bf16.mxu0 %v2492
    %2931 = vmatpush2.bf16.msra.mxu0 %v2491
    %2932 = vmatprep.subr.bf16.mxu0 %v2485
    %2933 = vmatpush2.bf16.msra.mxu0 %v2484
    %2934 = vmatprep.subr.bf16.mxu0 %v2478
    %2935 = vmatpush2.bf16.msra.mxu0 %v2477
    %2936 = vmatprep.subr.bf16.mxu0 %v2471
    %2937 = vmatpush2.bf16.msra.mxu0 %v2470
    %2938 = vmatprep.subr.bf16.mxu0 %v2464
    %2939 = vmatpush2.bf16.msra.mxu0 %v2463
    %2940 = vmatprep.subr.bf16.mxu0 %v2457
    %2941 = vmatpush2.bf16.msra.mxu0 %v2456
    %2942 = vmatprep.subr.bf16.mxu0 %v2450
    %2943 = vmatpush2.bf16.msra.mxu0 %v2449
    %2944 = vmatprep.subr.bf16.mxu0 %v2443
    %2945 = vmatpush2.bf16.msra.mxu0 %v2442
    %2946 = vmatprep.mubr.bf16.mxu0 %v1384
    %2947 = vmatmul.mubr.bf16.gmra.mxu0 %v1383
    %v2948 = vpop.f32.mrf.mxu0
    %v2949 = vadd.f32 %v1656, %v2948
    %v2950 = vpop.f32.mrf.mxu0
    %v2951 = vadd.f32 %v1660, %v2950
    %v2952 = vpop.f32.mrf.mxu0
    %v2953 = vpop.f32.mrf.mxu0
    %2954 = vdwg.mxu0
    %2955 = vmatprep.subr.bf16.mxu0 %v2548
    %2956 = vmatpush1.bf16.msra.mxu0 %v2547
    %2957 = vmatprep.subr.bf16.mxu0 %v2541
    %2958 = vmatpush1.bf16.msra.mxu0 %v2540
    %2959 = vmatprep.subr.bf16.mxu0 %v2534
    %2960 = vmatpush1.bf16.msra.mxu0 %v2533
    %2961 = vmatprep.subr.bf16.mxu0 %v2527
    %2962 = vmatpush1.bf16.msra.mxu0 %v2526
    %2963 = vmatprep.subr.bf16.mxu0 %v2520
    %2964 = vmatpush1.bf16.msra.mxu0 %v2519
    %2965 = vmatprep.subr.bf16.mxu0 %v2513
    %2966 = vmatpush1.bf16.msra.mxu0 %v2512
    %2967 = vmatprep.subr.bf16.mxu0 %v2506
    %2968 = vmatpush1.bf16.msra.mxu0 %v2505
    %2969 = vmatprep.subr.bf16.mxu0 %v2499
    %2970 = vmatpush1.bf16.msra.mxu0 %v2498
    %2971 = vmatprep.subr.bf16.mxu0 %v2604
    %2972 = vmatpush2.bf16.msra.mxu0 %v2603
    %2973 = vmatprep.subr.bf16.mxu0 %v2597
    %2974 = vmatpush2.bf16.msra.mxu0 %v2596
    %2975 = vmatprep.subr.bf16.mxu0 %v2590
    %2976 = vmatpush2.bf16.msra.mxu0 %v2589
    %2977 = vmatprep.subr.bf16.mxu0 %v2583
    %2978 = vmatpush2.bf16.msra.mxu0 %v2582
    %2979 = vmatprep.subr.bf16.mxu0 %v2576
    %2980 = vmatpush2.bf16.msra.mxu0 %v2575
    %2981 = vmatprep.subr.bf16.mxu0 %v2569
    %2982 = vmatpush2.bf16.msra.mxu0 %v2568
    %2983 = vmatprep.subr.bf16.mxu0 %v2562
    %2984 = vmatpush2.bf16.msra.mxu0 %v2561
    %2985 = vmatprep.subr.bf16.mxu0 %v2555
    %2986 = vmatpush2.bf16.msra.mxu0 %v2554
    %2987 = vmatprep.mubr.bf16.mxu0 %v1386
    %2988 = vmatmul.mubr.bf16.gmra.mxu0 %v1385
    %v2989 = vpop.f32.mrf.mxu0
    %v2990 = vadd.f32 %v2949, %v2989
    %v2991 = vpop.f32.mrf.mxu0
    %v2992 = vadd.f32 %v2951, %v2991
    %v2993 = vpop.f32.mrf.mxu0
    %v2994 = vpop.f32.mrf.mxu0
    %2995 = vdwg.mxu0
    %2996 = vmatprep.subr.bf16.mxu0 %v2438
    %2997 = vmatpush1.bf16.msra.mxu0 %v2437
    %2998 = vmatprep.subr.bf16.mxu0 %v2431
    %2999 = vmatpush1.bf16.msra.mxu0 %v2430
    %3000 = vmatprep.subr.bf16.mxu0 %v2424
    %3001 = vmatpush1.bf16.msra.mxu0 %v2423
    %3002 = vmatprep.subr.bf16.mxu0 %v2417
    %3003 = vmatpush1.bf16.msra.mxu0 %v2416
    %3004 = vmatprep.subr.bf16.mxu0 %v2410
    %3005 = vmatpush1.bf16.msra.mxu0 %v2409
    %3006 = vmatprep.subr.bf16.mxu0 %v2403
    %3007 = vmatpush1.bf16.msra.mxu0 %v2402
    %3008 = vmatprep.subr.bf16.mxu0 %v2396
    %3009 = vmatpush1.bf16.msra.mxu0 %v2395
    %3010 = vmatprep.subr.bf16.mxu0 %v2389
    %3011 = vmatpush1.bf16.msra.mxu0 %v2388
    %3012 = vmatprep.subr.bf16.mxu0 %v2494
    %3013 = vmatpush2.bf16.msra.mxu0 %v2493
    %3014 = vmatprep.subr.bf16.mxu0 %v2487
    %3015 = vmatpush2.bf16.msra.mxu0 %v2486
    %3016 = vmatprep.subr.bf16.mxu0 %v2480
    %3017 = vmatpush2.bf16.msra.mxu0 %v2479
    %3018 = vmatprep.subr.bf16.mxu0 %v2473
    %3019 = vmatpush2.bf16.msra.mxu0 %v2472
    %3020 = vmatprep.subr.bf16.mxu0 %v2466
    %3021 = vmatpush2.bf16.msra.mxu0 %v2465
    %3022 = vmatprep.subr.bf16.mxu0 %v2459
    %3023 = vmatpush2.bf16.msra.mxu0 %v2458
    %3024 = vmatprep.subr.bf16.mxu0 %v2452
    %3025 = vmatpush2.bf16.msra.mxu0 %v2451
    %3026 = vmatprep.subr.bf16.mxu0 %v2445
    %3027 = vmatpush2.bf16.msra.mxu0 %v2444
    %3028 = vmatprep.mubr.bf16.mxu0 %v1384
    %3029 = vmatmul.mubr.bf16.gmra.mxu0 %v1383
    %v3030 = vpop.f32.mrf.mxu0
    %v3031 = vadd.f32 %v1664, %v3030
    %v3032 = vpop.f32.mrf.mxu0
    %v3033 = vadd.f32 %v1668, %v3032
    %v3034 = vpop.f32.mrf.mxu0
    %v3035 = vpop.f32.mrf.mxu0
    %3036 = vdwg.mxu0
    %3037 = vmatprep.subr.bf16.mxu0 %v2550
    %3038 = vmatpush1.bf16.msra.mxu0 %v2549
    %3039 = vmatprep.subr.bf16.mxu0 %v2543
    %3040 = vmatpush1.bf16.msra.mxu0 %v2542
    %3041 = vmatprep.subr.bf16.mxu0 %v2536
    %3042 = vmatpush1.bf16.msra.mxu0 %v2535
    %3043 = vmatprep.subr.bf16.mxu0 %v2529
    %3044 = vmatpush1.bf16.msra.mxu0 %v2528
    %3045 = vmatprep.subr.bf16.mxu0 %v2522
    %3046 = vmatpush1.bf16.msra.mxu0 %v2521
    %3047 = vmatprep.subr.bf16.mxu0 %v2515
    %3048 = vmatpush1.bf16.msra.mxu0 %v2514
    %3049 = vmatprep.subr.bf16.mxu0 %v2508
    %3050 = vmatpush1.bf16.msra.mxu0 %v2507
    %3051 = vmatprep.subr.bf16.mxu0 %v2501
    %3052 = vmatpush1.bf16.msra.mxu0 %v2500
    %3053 = vmatprep.subr.bf16.mxu0 %v2606
    %3054 = vmatpush2.bf16.msra.mxu0 %v2605
    %3055 = vmatprep.subr.bf16.mxu0 %v2599
    %3056 = vmatpush2.bf16.msra.mxu0 %v2598
    %3057 = vmatprep.subr.bf16.mxu0 %v2592
    %3058 = vmatpush2.bf16.msra.mxu0 %v2591
    %3059 = vmatprep.subr.bf16.mxu0 %v2585
    %3060 = vmatpush2.bf16.msra.mxu0 %v2584
    %3061 = vmatprep.subr.bf16.mxu0 %v2578
    %3062 = vmatpush2.bf16.msra.mxu0 %v2577
    %3063 = vmatprep.subr.bf16.mxu0 %v2571
    %3064 = vmatpush2.bf16.msra.mxu0 %v2570
    %3065 = vmatprep.subr.bf16.mxu0 %v2564
    %3066 = vmatpush2.bf16.msra.mxu0 %v2563
    %3067 = vmatprep.subr.bf16.mxu0 %v2557
    %3068 = vmatpush2.bf16.msra.mxu0 %v2556
    %3069 = vmatprep.mubr.bf16.mxu0 %v1386
    %3070 = vmatmul.mubr.bf16.gmra.mxu0 %v1385
    %v3071 = vpop.f32.mrf.mxu0
    %v3072 = vadd.f32 %v3031, %v3071
    %v3073 = vpop.f32.mrf.mxu0
    %v3074 = vadd.f32 %v3033, %v3073
    %v3075 = vpop.f32.mrf.mxu0
    %v3076 = vpop.f32.mrf.mxu0
    %3077 = vdwg.mxu0
    %3078 = vmatprep.subr.bf16.mxu0 0
    %3079 = vmatpush1.bf16.msra.mxu0 %v2439
    %3080 = vmatprep.subr.bf16.mxu0 0
    %3081 = vmatpush1.bf16.msra.mxu0 %v2432
    %3082 = vmatprep.subr.bf16.mxu0 0
    %3083 = vmatpush1.bf16.msra.mxu0 %v2425
    %3084 = vmatprep.subr.bf16.mxu0 0
    %3085 = vmatpush1.bf16.msra.mxu0 %v2418
    %3086 = vmatprep.subr.bf16.mxu0 0
    %3087 = vmatpush1.bf16.msra.mxu0 %v2411
    %3088 = vmatprep.subr.bf16.mxu0 0
    %3089 = vmatpush1.bf16.msra.mxu0 %v2404
    %3090 = vmatprep.subr.bf16.mxu0 0
    %3091 = vmatpush1.bf16.msra.mxu0 %v2397
    %3092 = vmatprep.subr.bf16.mxu0 0
    %3093 = vmatpush1.bf16.msra.mxu0 %v2390
    %3094 = vmatprep.subr.bf16.mxu0 0
    %3095 = vmatpush2.bf16.msra.mxu0 %v2495
    %3096 = vmatprep.subr.bf16.mxu0 0
    %3097 = vmatpush2.bf16.msra.mxu0 %v2488
    %3098 = vmatprep.subr.bf16.mxu0 0
    %3099 = vmatpush2.bf16.msra.mxu0 %v2481
    %3100 = vmatprep.subr.bf16.mxu0 0
    %3101 = vmatpush2.bf16.msra.mxu0 %v2474
    %3102 = vmatprep.subr.bf16.mxu0 0
    %3103 = vmatpush2.bf16.msra.mxu0 %v2467
    %3104 = vmatprep.subr.bf16.mxu0 0
    %3105 = vmatpush2.bf16.msra.mxu0 %v2460
    %3106 = vmatprep.subr.bf16.mxu0 0
    %3107 = vmatpush2.bf16.msra.mxu0 %v2453
    %3108 = vmatprep.subr.bf16.mxu0 0
    %3109 = vmatpush2.bf16.msra.mxu0 %v2446
    %3110 = vmatprep.mubr.bf16.mxu0 %v1384
    %3111 = vmatmul.mubr.bf16.gmra.mxu0 %v1383
    %v3112 = vpop.f32.mrf.mxu0
    %v3113 = vadd.f32 %v1672, %v3112
    %v3114 = vpop.f32.mrf.mxu0
    %v3115 = vpop.f32.mrf.mxu0
    %v3116 = vpop.f32.mrf.mxu0
    %3117 = vdwg.mxu0
    %3118 = vmatprep.subr.bf16.mxu0 0
    %3119 = vmatpush1.bf16.msra.mxu0 %v2551
    %3120 = vmatprep.subr.bf16.mxu0 0
    %3121 = vmatpush1.bf16.msra.mxu0 %v2544
    %3122 = vmatprep.subr.bf16.mxu0 0
    %3123 = vmatpush1.bf16.msra.mxu0 %v2537
    %3124 = vmatprep.subr.bf16.mxu0 0
    %3125 = vmatpush1.bf16.msra.mxu0 %v2530
    %3126 = vmatprep.subr.bf16.mxu0 0
    %3127 = vmatpush1.bf16.msra.mxu0 %v2523
    %3128 = vmatprep.subr.bf16.mxu0 0
    %3129 = vmatpush1.bf16.msra.mxu0 %v2516
    %3130 = vmatprep.subr.bf16.mxu0 0
    %3131 = vmatpush1.bf16.msra.mxu0 %v2509
    %3132 = vmatprep.subr.bf16.mxu0 0
    %3133 = vmatpush1.bf16.msra.mxu0 %v2502
    %3134 = vmatprep.subr.bf16.mxu0 0
    %3135 = vmatpush2.bf16.msra.mxu0 %v2607
    %3136 = vmatprep.subr.bf16.mxu0 0
    %3137 = vmatpush2.bf16.msra.mxu0 %v2600
    %3138 = vmatprep.subr.bf16.mxu0 0
    %3139 = vmatpush2.bf16.msra.mxu0 %v2593
    %3140 = vmatprep.subr.bf16.mxu0 0
    %3141 = vmatpush2.bf16.msra.mxu0 %v2586
    %3142 = vmatprep.subr.bf16.mxu0 0
    %3143 = vmatpush2.bf16.msra.mxu0 %v2579
    %3144 = vmatprep.subr.bf16.mxu0 0
    %3145 = vmatpush2.bf16.msra.mxu0 %v2572
    %3146 = vmatprep.subr.bf16.mxu0 0
    %3147 = vmatpush2.bf16.msra.mxu0 %v2565
    %3148 = vmatprep.subr.bf16.mxu0 0
    %3149 = vmatpush2.bf16.msra.mxu0 %v2558
    %3150 = vmatprep.mubr.bf16.mxu0 %v1386
    %3151 = vmatmul.mubr.bf16.gmra.mxu0 %v1385
    %v3152 = vpop.f32.mrf.mxu0
    %v3153 = vadd.f32 %v3113, %v3152
    %v3154 = vpop.f32.mrf.mxu0
    %v3155 = vpop.f32.mrf.mxu0
    %v3156 = vpop.f32.mrf.mxu0
    %3157 = vdwg.mxu0
    %v3158 = vtanh.pop %v2908
    %v3159 = vtanh.pop %v2910
    %v3160 = vtanh.pop %v2990
    %v3161 = vtanh.pop %v2992
    %v3162 = vtanh.pop %v3072
    %v3163 = vtanh.pop %v3074
    %v3164 = vtanh.pop %v3153
    %v3165 = vpack.c.bf16 %v3158, %v3158
    %v3166 = vpack.c.bf16 %v3159, %v3159
    %v3167 = vpack.c.bf16 %v3160, %v3160
    %v3168 = vpack.c.bf16 %v3161, %v3161
    %v3169 = vpack.c.bf16 %v3162, %v3162
    %v3170 = vpack.c.bf16 %v3163, %v3163
    %v3171 = vpack.c.bf16 %v3164, %v3164
    %v3179 = vunpack.c.l.b16 %v3165
    %v3180 = vunpack.c.l.b16 %v3166
    %v3181 = vunpack.c.l.b16 %v3167
    %v3182 = vunpack.c.l.b16 %v3168
    %v3183 = vunpack.c.l.b16 %v3169
    %v3184 = vunpack.c.l.b16 %v3170
    %v3185 = vunpack.c.l.b16 %v3171
    %v3186 = vpack.c.b16 %v3180, %v3179
    %v3187 = vpack.c.b16 %v3182, %v3181
    %v3188 = vpack.c.b16 %v3184, %v3183
    %v3189 = vpack.c.b16 %v3185, %v3185
    %3194 = vst [vmem:[#allocation13] sm:$0xff] %v3186
    %3195 = vst [vmem:[#allocation13 + $0x8] sm:$0xff] %v3187
    %3196 = vst [vmem:[#allocation13 + $0x10] sm:$0xff] %v3188
    %3197 = vst [vmem:[#allocation13 + $0x18] sm:$0xf] %v3189
    // Predicated region
    $region54: #{tpu_custom_call.1} parent=1 // pred_check
      _
    $region55: #{tpu_custom_call.1} parent=1 // pred_check_branch
      %3199 = sbr.rel (0) target = $region57
    $region56: #{tpu_custom_call.1} parent=1 // pred_region
      %s3201 = ssub.s32 448, 448
      %3202 = vsyncadd [#allocation4], %s3201
      %s3204 = sshll.u32 [#allocation13], 4
      %s3205 = int_to_ptr.vmem [resolvable:$true] %s3204
      %3207 = dma.vmem_to_hbm [thread:$0]  %s3205, 448, %s7, [#allocation4]
    $region57: #{tpu_custom_call.1} parent=1 // pred_fallthru
      _
    // Predicated region
    $region58: #{tpu_custom_call.1} parent=1 // pred_check
      _
    $region59: #{tpu_custom_call.1} parent=1 // pred_check_branch
      %3209 = sbr.rel (0) target = $region61
    $region60: #{tpu_custom_call.1} parent=1 // pred_region
      %3210 = dma.done [#allocation4], 448
    $region61: #{tpu_custom_call.1} parent=1 // pred_fallthru
      _
    %3211 = vsyncpa [#allocation3], 1
    %3212 = vsyncpa [#allocation6], 1
    %3213 = vsyncpa [#allocation9], 1
    %3214 = vsyncpa [#allocation12], 1
    %3215 = vsyncpa [#allocation4], 1

</llo_original>
